<compile_context>
chip_gen: v7x
topology: tpu7x:2x2x1
jax: 0.10.0
libtpu: 0.0.40
codegen_flags: <defaults>
</compile_context>

<pallas_src>
import functools

import jax
import jax.numpy as jnp
from jax import lax
from jax.experimental import pallas as pl
from jax.experimental.pallas import tpu as pltpu


def _kernel_conv_kernel(mask_ref, z_ref, core_ref, w_ref, out_ref, *, K, W, TILE, CH):
    """One (plane-group, spatial-tile) grid step.

    mask_ref : (K, TILE)         0/1 horizontal-validity mask per j offset (lane = flat spatial)
    z_ref    : (G, TILE + halo)  flat, h-padded frame window for this plane group / spatial tile
    core_ref : (G, K*K, TILE)    per-pixel filter taps
    w_ref    : (G, TILE)         per-pixel output gain
    out_ref  : (G, TILE)
    """
    G = out_ref.shape[0]

    def do_chunk(off):
        # Working set ~4 live (G, CH) f32 values -> bounded vregs no matter how big TILE is.
        acc = jnp.zeros((G, CH), jnp.float32)
        for j in range(K):                                   # taps fully unrolled (K*K)
            part = jnp.zeros((G, CH), jnp.float32)
            for i in range(K):
                # static-offset contiguous lane slice of the flat frame == (i, j) shifted window
                win = z_ref[:, pl.ds(off + i * W + j, CH)]                     # (G, CH)
                part = part + core_ref[:, i * K + j, pl.ds(off, CH)] * win
            # horizontal mask factored out of the i loop: K*(K-1) fewer VPU multiplies per elem
            acc = acc + mask_ref[pl.ds(j, 1), pl.ds(off, CH)] * part
        out_ref[:, pl.ds(off, CH)] = w_ref[:, pl.ds(off, CH)] * acc

    if CH == TILE:
        do_chunk(0)
    else:
        def body(c, carry):
            do_chunk(pl.multiple_of(c * CH, CH))
            return carry
        lax.fori_loop(0, TILE // CH, body, 0)


def _largest_divisor(n, cap, multiple_of=1):
    cap = max(multiple_of, min(n, cap))
    for d in range(cap, 0, -1):
        if n % d == 0 and d % multiple_of == 0:
            return d
    return 1


def _largest_aligned_divisor(n, cap, align):
    for d in range((cap // align) * align, 0, -align):
        if d > 0 and n % d == 0:
            return d
    return None


def _pick_chunk(tile, cap):
    """Largest sub-chunk width <= cap that divides `tile`, preferring 128-aligned."""
    if tile <= cap:
        return tile
    d = _largest_aligned_divisor(tile, cap, 128)
    if d is not None:
        return d
    for c in range(cap, 0, -1):
        if tile % c == 0:
            return c
    return tile


def kernel_conv(frames, core, w_gain, kernel_size=5):
    """Pallas implementation of KernelConv.forward (core_bias=False)."""
    K = kernel_size
    assert K % 2 == 1, "only odd kernel_size matches the PyTorch padding semantics"
    B, N, H, Wd = frames.shape
    assert core.shape == (B, N * K * K, H, Wd)
    assert w_gain.shape == (B, N, H, Wd)

    pad = K // 2
    BN, HW = B * N, H * Wd
    halo = (K - 1) * (Wd + 1)            # largest flat-window offset

    ELEM_BUDGET = 65536   # target G*TILE elems / grid step (~6.6 MB core bytes -> amortizes step overhead)
    SUB_ELEMS = 8192      # in-kernel sub-chunk elems (keeps acc/partial/win/tap within ~32 vregs)

    # ---- plane grouping G (sublane axis): prefer G >= 8 (full sublanes); cap G so the spatial
    #      tile stays >= the halo (bounds duplicated frame bytes on a small, non-dominant tensor) ----
    g_cap = max(1, ELEM_BUDGET // max(128, min(HW, halo)))
    if BN % 8 == 0:
        G = _largest_divisor(BN, max(8, g_cap), multiple_of=8)
    else:
        # TODO(synk): when B*N is not a multiple of 8 the (G, lanes) operands underfill sublanes;
        # a spatial-rows-on-sublanes layout would recover that but is not implemented here.
        G = _largest_divisor(BN, max(1, g_cap))

    # ---- spatial tiling (lane axis): whole-tile == full plane, else 128-aligned tiles ----
    tile_budget = max(128, ELEM_BUDGET // G)
    if HW <= tile_budget:
        TILE, S, HW_pad = HW, 1, HW
    else:
        TILE = _largest_aligned_divisor(HW, tile_budget, 128)
        if TILE is not None:
            S, HW_pad = HW // TILE, HW
        else:
            # ragged spatial size: pad the flat spatial axis so every tile is 128-aligned
            TILE = max(128, (tile_budget // 128) * 128)
            S = -(-HW // TILE)
            HW_pad = S * TILE

    BNo = BN // G
    # megacore: keep >= 2 grid steps when the problem is big enough to split across TensorCores
    while BNo * S < 2 and G >= 16 and G % 2 == 0:
        G //= 2
        BNo = BN // G

    CH = _pick_chunk(TILE, max(128, SUB_ELEMS // max(8, G)))
    Lt = TILE + halo

    # ---- cheap, frame-sized glue: h-pad, flatten, end/ragged pad, halo'd overlapping tiles ----
    frames_hpad = jnp.pad(frames, ((0, 0), (0, 0), (pad, pad), (0, 0)))
    zflat = frames_hpad.reshape(BN, (H + 2 * pad) * Wd)
    zflat = jnp.pad(zflat, ((0, 0), (pad, pad + (HW_pad - HW))))     # (BN, HW_pad + halo)
    if S == 1:
        zt = zflat[:, None, :]                                       # (BN, 1, Lt)
    else:
        idx = (jnp.arange(S, dtype=jnp.int32)[:, None] * TILE
               + jnp.arange(Lt, dtype=jnp.int32)[None, :])           # (S, Lt)
        zt = zflat[:, idx]                                           # (BN, S, Lt) overlapping tiles
    zt = zt.reshape(BNo, G, S, Lt).transpose(2, 0, 1, 3)             # (S, BNo, G, Lt)

    # per-j horizontal validity masks over the (padded) flat spatial axis
    col = jnp.arange(HW_pad, dtype=jnp.int32) % Wd
    masks = jnp.stack(
        [((col + (j - pad) >= 0) & (col + (j - pad) < Wd)).astype(jnp.float32)
         for j in range(K)], axis=0)                                 # (K, HW_pad)

    # contiguous reshapes (lane axis = flat spatial); matches torch.split N-major tap order
    core_r = core.reshape(BN, K * K, HW)
    w_r = w_gain.reshape(BN, HW)
    if HW_pad > HW:
        # extra HBM pass over core only for ragged spatial sizes (robustness fallback)
        core_r = jnp.pad(core_r, ((0, 0), (0, 0), (0, HW_pad - HW)))
        w_r = jnp.pad(w_r, ((0, 0), (0, HW_pad - HW)))
    core_r = core_r.reshape(BNo, G, K * K, HW_pad)
    w_r = w_r.reshape(BNo, G, HW_pad)

    # ---- VMEM limit from actual (double-buffered) block footprints; v7x-safe cap ----
    rup = lambda x, m: -(-x // m) * m
    blk_bytes = (G * rup(K * K, 8) * TILE            # core taps (K*K sublanes pad 25 -> 32)
                 + rup(G, 8) * rup(Lt, 128)          # frame window
                 + 2 * rup(G, 8) * rup(TILE, 128)    # gain + out
                 + rup(K, 8) * rup(TILE, 128)) * 4   # masks
    vmem_limit = int(min(48 * 1024 * 1024, max(32 * 1024 * 1024, 2 * blk_bytes + (4 << 20))))

    kernel = functools.partial(_kernel_conv_kernel, K=K, W=Wd, TILE=TILE, CH=CH)

    out = pl.pallas_call(
        kernel,
        out_shape=jax.ShapeDtypeStruct((BNo, G, HW_pad), jnp.float32),
        grid_spec=pltpu.PrefetchScalarGridSpec(
            num_scalar_prefetch=0,
            grid=(BNo, S),
            in_specs=[
                pl.BlockSpec((K, TILE), lambda bn, s: (0, s)),                      # masks
                pl.BlockSpec((None, None, G, Lt), lambda bn, s: (s, bn, 0, 0)),     # frame window
                pl.BlockSpec((None, G, K * K, TILE), lambda bn, s: (bn, 0, 0, s)),  # core taps
                pl.BlockSpec((None, G, TILE), lambda bn, s: (bn, 0, s)),            # gain
            ],
            out_specs=pl.BlockSpec((None, G, TILE), lambda bn, s: (bn, 0, s)),
        ),
        compiler_params=pltpu.CompilerParams(
            dimension_semantics=("parallel", "parallel"),
            vmem_limit_bytes=vmem_limit,
        ),
    )(masks, zt, core_r, w_r)
    return out.reshape(BN, HW_pad)[:, :HW].reshape(B, N, H, Wd)


def kernel_conv_ref(frames, core, w_gain, kernel_size=5):
    """Pure-JAX reference matching the PyTorch semantics exactly."""
    K = kernel_size
    B, N, H, Wd = frames.shape
    pad = K // 2
    core_split = core.reshape(B, N, K * K, H, Wd)
    frame_pad = jnp.pad(frames, ((0, 0), (0, 0), (pad, pad), (pad, pad)))
    shifts = []
    for i in range(K):
        for j in range(K):
            shifts.append(frame_pad[..., i:i + H, j:j + Wd])
    stacked = jnp.stack(shifts, axis=2)               # (B, N, K*K, H, W)
    pred = jnp.sum(core_split * stacked, axis=2)      # (B, N, H, W)
    return w_gain * pred


if __name__ == "__main__":
    key = jax.random.PRNGKey(0)
    B, N, H, Wd, K = 2, 4, 16, 16, 5

    k1, k2, k3 = jax.random.split(key, 3)
    frames = jax.random.normal(k1, (B, N, H, Wd), dtype=jnp.float32)
    core = jax.random.normal(k2, (B, N * K * K, H, Wd), dtype=jnp.float32)
    w_gain = jax.random.normal(k3, (B, N, H, Wd), dtype=jnp.float32)

    out = kernel_conv(frames, core, w_gain, kernel_size=K)
    out = jax.block_until_ready(out)

    ref = kernel_conv_ref(frames, core, w_gain, kernel_size=K)
    assert out.shape == (B, N, H, Wd)
    assert jnp.allclose(out, ref, atol=1e-4, rtol=1e-4), "mismatch vs reference"

    # TODO(synk): core_bias=True branch not implemented (the PyTorch module references an
    # undefined `bias` variable there and would raise as well).
    # TODO(synk): if the producer can emit `core` in bfloat16, reading it as bf16 and
    # accumulating in f32 would nearly halve HBM traffic on this memory-bound kernel.

    print("KERNEL_OK")
</pallas_src>

<mosaic_0001>
module attributes {stable_mosaic.version = 11 : i64} {
  func.func @_kernel_conv_kernel(%arg0: i32, %arg1: i32, %arg2: memref<5x256xf32, #tpu.memory_space<vmem>>, %arg3: memref<1x1x8x324xf32, #tpu.memory_space<vmem>>, %arg4: memref<1x8x25x256xf32, #tpu.memory_space<vmem>>, %arg5: memref<1x8x256xf32, #tpu.memory_space<vmem>>, %arg6: memref<1x8x256xf32, #tpu.memory_space<vmem>>) attributes {dimension_semantics = [#tpu.dimension_semantics<parallel>, #tpu.dimension_semantics<parallel>], iteration_bounds = array<i64: 1, 1>, scalar_prefetch = 0 : i64, scratch_operands = 0 : i64, tpu.core_type = #tpu.core_type<tc>, window_params = [{transform_indices = @transform_0, window_bounds = array<i64: 5, 256>}, {transform_indices = @transform_1, window_bounds = array<i64: 1, 1, 8, 324>}, {transform_indices = @transform_2, window_bounds = array<i64: 1, 8, 25, 256>}, {transform_indices = @transform_3, window_bounds = array<i64: 1, 8, 256>}, {transform_indices = @transform_4, window_bounds = array<i64: 1, 8, 256>}]} {
    %cst = arith.constant 0.000000e+00 : f32
    %0 = vector.broadcast %cst : f32 to vector<8x256xf32>
    %cst_0 = arith.constant 0.000000e+00 : f32
    %1 = vector.broadcast %cst_0 : f32 to vector<8x256xf32>
    %c0 = arith.constant 0 : index
    %c0_1 = arith.constant 0 : index
    %c0_2 = arith.constant 0 : index
    %c0_3 = arith.constant 0 : index
    %2 = vector.load %arg3[%c0, %c0_1, %c0_2, %c0_3] : memref<1x1x8x324xf32, #tpu.memory_space<vmem>>, vector<1x1x8x256xf32>
    %3 = vector.shape_cast %2 : vector<1x1x8x256xf32> to vector<8x256xf32>
    %c0_4 = arith.constant 0 : index
    %c0_5 = arith.constant 0 : index
    %c0_6 = arith.constant 0 : index
    %c0_7 = arith.constant 0 : index
    %4 = vector.load %arg4[%c0_4, %c0_5, %c0_6, %c0_7] : memref<1x8x25x256xf32, #tpu.memory_space<vmem>>, vector<1x8x1x256xf32>
    %5 = vector.shape_cast %4 : vector<1x8x1x256xf32> to vector<8x256xf32>
    %6 = arith.mulf %5, %3 : vector<8x256xf32>
    %7 = arith.addf %1, %6 : vector<8x256xf32>
    %c0_8 = arith.constant 0 : index
    %c0_9 = arith.constant 0 : index
    %c0_10 = arith.constant 0 : index
    %c16 = arith.constant 16 : index
    %8 = vector.load %arg3[%c0_8, %c0_9, %c0_10, %c16] : memref<1x1x8x324xf32, #tpu.memory_space<vmem>>, vector<1x1x8x256xf32>
    %9 = vector.shape_cast %8 : vector<1x1x8x256xf32> to vector<8x256xf32>
    %c0_11 = arith.constant 0 : index
    %c0_12 = arith.constant 0 : index
    %c5 = arith.constant 5 : index
    %c0_13 = arith.constant 0 : index
    %10 = vector.load %arg4[%c0_11, %c0_12, %c5, %c0_13] : memref<1x8x25x256xf32, #tpu.memory_space<vmem>>, vector<1x8x1x256xf32>
    %11 = vector.shape_cast %10 : vector<1x8x1x256xf32> to vector<8x256xf32>
    %12 = arith.mulf %11, %9 : vector<8x256xf32>
    %13 = arith.addf %7, %12 : vector<8x256xf32>
    %c0_14 = arith.constant 0 : index
    %c0_15 = arith.constant 0 : index
    %c0_16 = arith.constant 0 : index
    %c32 = arith.constant 32 : index
    %14 = vector.load %arg3[%c0_14, %c0_15, %c0_16, %c32] : memref<1x1x8x324xf32, #tpu.memory_space<vmem>>, vector<1x1x8x256xf32>
    %15 = vector.shape_cast %14 : vector<1x1x8x256xf32> to vector<8x256xf32>
    %c0_17 = arith.constant 0 : index
    %c0_18 = arith.constant 0 : index
    %c10 = arith.constant 10 : index
    %c0_19 = arith.constant 0 : index
    %16 = vector.load %arg4[%c0_17, %c0_18, %c10, %c0_19] : memref<1x8x25x256xf32, #tpu.memory_space<vmem>>, vector<1x8x1x256xf32>
    %17 = vector.shape_cast %16 : vector<1x8x1x256xf32> to vector<8x256xf32>
    %18 = arith.mulf %17, %15 : vector<8x256xf32>
    %19 = arith.addf %13, %18 : vector<8x256xf32>
    %c0_20 = arith.constant 0 : index
    %c0_21 = arith.constant 0 : index
    %c0_22 = arith.constant 0 : index
    %c48 = arith.constant 48 : index
    %20 = vector.load %arg3[%c0_20, %c0_21, %c0_22, %c48] : memref<1x1x8x324xf32, #tpu.memory_space<vmem>>, vector<1x1x8x256xf32>
    %21 = vector.shape_cast %20 : vector<1x1x8x256xf32> to vector<8x256xf32>
    %c0_23 = arith.constant 0 : index
    %c0_24 = arith.constant 0 : index
    %c15 = arith.constant 15 : index
    %c0_25 = arith.constant 0 : index
    %22 = vector.load %arg4[%c0_23, %c0_24, %c15, %c0_25] : memref<1x8x25x256xf32, #tpu.memory_space<vmem>>, vector<1x8x1x256xf32>
    %23 = vector.shape_cast %22 : vector<1x8x1x256xf32> to vector<8x256xf32>
    %24 = arith.mulf %23, %21 : vector<8x256xf32>
    %25 = arith.addf %19, %24 : vector<8x256xf32>
    %c0_26 = arith.constant 0 : index
    %c0_27 = arith.constant 0 : index
    %c0_28 = arith.constant 0 : index
    %c64 = arith.constant 64 : index
    %26 = vector.load %arg3[%c0_26, %c0_27, %c0_28, %c64] : memref<1x1x8x324xf32, #tpu.memory_space<vmem>>, vector<1x1x8x256xf32>
    %27 = vector.shape_cast %26 : vector<1x1x8x256xf32> to vector<8x256xf32>
    %c0_29 = arith.constant 0 : index
    %c0_30 = arith.constant 0 : index
    %c20 = arith.constant 20 : index
    %c0_31 = arith.constant 0 : index
    %28 = vector.load %arg4[%c0_29, %c0_30, %c20, %c0_31] : memref<1x8x25x256xf32, #tpu.memory_space<vmem>>, vector<1x8x1x256xf32>
    %29 = vector.shape_cast %28 : vector<1x8x1x256xf32> to vector<8x256xf32>
    %30 = arith.mulf %29, %27 : vector<8x256xf32>
    %31 = arith.addf %25, %30 : vector<8x256xf32>
    %c0_32 = arith.constant 0 : index
    %c0_33 = arith.constant 0 : index
    %32 = vector.load %arg2[%c0_32, %c0_33] : memref<5x256xf32, #tpu.memory_space<vmem>>, vector<1x256xf32>
    %33 = vector.broadcast %32 : vector<1x256xf32> to vector<8x256xf32>
    %34 = arith.mulf %33, %31 : vector<8x256xf32>
    %35 = arith.addf %0, %34 : vector<8x256xf32>
    %cst_34 = arith.constant 0.000000e+00 : f32
    %36 = vector.broadcast %cst_34 : f32 to vector<8x256xf32>
    %c0_35 = arith.constant 0 : index
    %c0_36 = arith.constant 0 : index
    %c0_37 = arith.constant 0 : index
    %c1 = arith.constant 1 : index
    %37 = vector.load %arg3[%c0_35, %c0_36, %c0_37, %c1] : memref<1x1x8x324xf32, #tpu.memory_space<vmem>>, vector<1x1x8x256xf32>
    %38 = vector.shape_cast %37 : vector<1x1x8x256xf32> to vector<8x256xf32>
    %c0_38 = arith.constant 0 : index
    %c0_39 = arith.constant 0 : index
    %c1_40 = arith.constant 1 : index
    %c0_41 = arith.constant 0 : index
    %39 = vector.load %arg4[%c0_38, %c0_39, %c1_40, %c0_41] : memref<1x8x25x256xf32, #tpu.memory_space<vmem>>, vector<1x8x1x256xf32>
    %40 = vector.shape_cast %39 : vector<1x8x1x256xf32> to vector<8x256xf32>
    %41 = arith.mulf %40, %38 : vector<8x256xf32>
    %42 = arith.addf %36, %41 : vector<8x256xf32>
    %c0_42 = arith.constant 0 : index
    %c0_43 = arith.constant 0 : index
    %c0_44 = arith.constant 0 : index
    %c17 = arith.constant 17 : index
    %43 = vector.load %arg3[%c0_42, %c0_43, %c0_44, %c17] : memref<1x1x8x324xf32, #tpu.memory_space<vmem>>, vector<1x1x8x256xf32>
    %44 = vector.shape_cast %43 : vector<1x1x8x256xf32> to vector<8x256xf32>
    %c0_45 = arith.constant 0 : index
    %c0_46 = arith.constant 0 : index
    %c6 = arith.constant 6 : index
    %c0_47 = arith.constant 0 : index
    %45 = vector.load %arg4[%c0_45, %c0_46, %c6, %c0_47] : memref<1x8x25x256xf32, #tpu.memory_space<vmem>>, vector<1x8x1x256xf32>
    %46 = vector.shape_cast %45 : vector<1x8x1x256xf32> to vector<8x256xf32>
    %47 = arith.mulf %46, %44 : vector<8x256xf32>
    %48 = arith.addf %42, %47 : vector<8x256xf32>
    %c0_48 = arith.constant 0 : index
    %c0_49 = arith.constant 0 : index
    %c0_50 = arith.constant 0 : index
    %c33 = arith.constant 33 : index
    %49 = vector.load %arg3[%c0_48, %c0_49, %c0_50, %c33] : memref<1x1x8x324xf32, #tpu.memory_space<vmem>>, vector<1x1x8x256xf32>
    %50 = vector.shape_cast %49 : vector<1x1x8x256xf32> to vector<8x256xf32>
    %c0_51 = arith.constant 0 : index
    %c0_52 = arith.constant 0 : index
    %c11 = arith.constant 11 : index
    %c0_53 = arith.constant 0 : index
    %51 = vector.load %arg4[%c0_51, %c0_52, %c11, %c0_53] : memref<1x8x25x256xf32, #tpu.memory_space<vmem>>, vector<1x8x1x256xf32>
    %52 = vector.shape_cast %51 : vector<1x8x1x256xf32> to vector<8x256xf32>
    %53 = arith.mulf %52, %50 : vector<8x256xf32>
    %54 = arith.addf %48, %53 : vector<8x256xf32>
    %c0_54 = arith.constant 0 : index
    %c0_55 = arith.constant 0 : index
    %c0_56 = arith.constant 0 : index
    %c49 = arith.constant 49 : index
    %55 = vector.load %arg3[%c0_54, %c0_55, %c0_56, %c49] : memref<1x1x8x324xf32, #tpu.memory_space<vmem>>, vector<1x1x8x256xf32>
    %56 = vector.shape_cast %55 : vector<1x1x8x256xf32> to vector<8x256xf32>
    %c0_57 = arith.constant 0 : index
    %c0_58 = arith.constant 0 : index
    %c16_59 = arith.constant 16 : index
    %c0_60 = arith.constant 0 : index
    %57 = vector.load %arg4[%c0_57, %c0_58, %c16_59, %c0_60] : memref<1x8x25x256xf32, #tpu.memory_space<vmem>>, vector<1x8x1x256xf32>
    %58 = vector.shape_cast %57 : vector<1x8x1x256xf32> to vector<8x256xf32>
    %59 = arith.mulf %58, %56 : vector<8x256xf32>
    %60 = arith.addf %54, %59 : vector<8x256xf32>
    %c0_61 = arith.constant 0 : index
    %c0_62 = arith.constant 0 : index
    %c0_63 = arith.constant 0 : index
    %c65 = arith.constant 65 : index
    %61 = vector.load %arg3[%c0_61, %c0_62, %c0_63, %c65] : memref<1x1x8x324xf32, #tpu.memory_space<vmem>>, vector<1x1x8x256xf32>
    %62 = vector.shape_cast %61 : vector<1x1x8x256xf32> to vector<8x256xf32>
    %c0_64 = arith.constant 0 : index
    %c0_65 = arith.constant 0 : index
    %c21 = arith.constant 21 : index
    %c0_66 = arith.constant 0 : index
    %63 = vector.load %arg4[%c0_64, %c0_65, %c21, %c0_66] : memref<1x8x25x256xf32, #tpu.memory_space<vmem>>, vector<1x8x1x256xf32>
    %64 = vector.shape_cast %63 : vector<1x8x1x256xf32> to vector<8x256xf32>
    %65 = arith.mulf %64, %62 : vector<8x256xf32>
    %66 = arith.addf %60, %65 : vector<8x256xf32>
    %c1_67 = arith.constant 1 : index
    %c0_68 = arith.constant 0 : index
    %67 = vector.load %arg2[%c1_67, %c0_68] : memref<5x256xf32, #tpu.memory_space<vmem>>, vector<1x256xf32>
    %68 = vector.broadcast %67 : vector<1x256xf32> to vector<8x256xf32>
    %69 = arith.mulf %68, %66 : vector<8x256xf32>
    %70 = arith.addf %35, %69 : vector<8x256xf32>
    %cst_69 = arith.constant 0.000000e+00 : f32
    %71 = vector.broadcast %cst_69 : f32 to vector<8x256xf32>
    %c0_70 = arith.constant 0 : index
    %c0_71 = arith.constant 0 : index
    %c0_72 = arith.constant 0 : index
    %c2 = arith.constant 2 : index
    %72 = vector.load %arg3[%c0_70, %c0_71, %c0_72, %c2] : memref<1x1x8x324xf32, #tpu.memory_space<vmem>>, vector<1x1x8x256xf32>
    %73 = vector.shape_cast %72 : vector<1x1x8x256xf32> to vector<8x256xf32>
    %c0_73 = arith.constant 0 : index
    %c0_74 = arith.constant 0 : index
    %c2_75 = arith.constant 2 : index
    %c0_76 = arith.constant 0 : index
    %74 = vector.load %arg4[%c0_73, %c0_74, %c2_75, %c0_76] : memref<1x8x25x256xf32, #tpu.memory_space<vmem>>, vector<1x8x1x256xf32>
    %75 = vector.shape_cast %74 : vector<1x8x1x256xf32> to vector<8x256xf32>
    %76 = arith.mulf %75, %73 : vector<8x256xf32>
    %77 = arith.addf %71, %76 : vector<8x256xf32>
    %c0_77 = arith.constant 0 : index
    %c0_78 = arith.constant 0 : index
    %c0_79 = arith.constant 0 : index
    %c18 = arith.constant 18 : index
    %78 = vector.load %arg3[%c0_77, %c0_78, %c0_79, %c18] : memref<1x1x8x324xf32, #tpu.memory_space<vmem>>, vector<1x1x8x256xf32>
    %79 = vector.shape_cast %78 : vector<1x1x8x256xf32> to vector<8x256xf32>
    %c0_80 = arith.constant 0 : index
    %c0_81 = arith.constant 0 : index
    %c7 = arith.constant 7 : index
    %c0_82 = arith.constant 0 : index
    %80 = vector.load %arg4[%c0_80, %c0_81, %c7, %c0_82] : memref<1x8x25x256xf32, #tpu.memory_space<vmem>>, vector<1x8x1x256xf32>
    %81 = vector.shape_cast %80 : vector<1x8x1x256xf32> to vector<8x256xf32>
    %82 = arith.mulf %81, %79 : vector<8x256xf32>
    %83 = arith.addf %77, %82 : vector<8x256xf32>
    %c0_83 = arith.constant 0 : index
    %c0_84 = arith.constant 0 : index
    %c0_85 = arith.constant 0 : index
    %c34 = arith.constant 34 : index
    %84 = vector.load %arg3[%c0_83, %c0_84, %c0_85, %c34] : memref<1x1x8x324xf32, #tpu.memory_space<vmem>>, vector<1x1x8x256xf32>
    %85 = vector.shape_cast %84 : vector<1x1x8x256xf32> to vector<8x256xf32>
    %c0_86 = arith.constant 0 : index
    %c0_87 = arith.constant 0 : index
    %c12 = arith.constant 12 : index
    %c0_88 = arith.constant 0 : index
    %86 = vector.load %arg4[%c0_86, %c0_87, %c12, %c0_88] : memref<1x8x25x256xf32, #tpu.memory_space<vmem>>, vector<1x8x1x256xf32>
    %87 = vector.shape_cast %86 : vector<1x8x1x256xf32> to vector<8x256xf32>
    %88 = arith.mulf %87, %85 : vector<8x256xf32>
    %89 = arith.addf %83, %88 : vector<8x256xf32>
    %c0_89 = arith.constant 0 : index
    %c0_90 = arith.constant 0 : index
    %c0_91 = arith.constant 0 : index
    %c50 = arith.constant 50 : index
    %90 = vector.load %arg3[%c0_89, %c0_90, %c0_91, %c50] : memref<1x1x8x324xf32, #tpu.memory_space<vmem>>, vector<1x1x8x256xf32>
    %91 = vector.shape_cast %90 : vector<1x1x8x256xf32> to vector<8x256xf32>
    %c0_92 = arith.constant 0 : index
    %c0_93 = arith.constant 0 : index
    %c17_94 = arith.constant 17 : index
    %c0_95 = arith.constant 0 : index
    %92 = vector.load %arg4[%c0_92, %c0_93, %c17_94, %c0_95] : memref<1x8x25x256xf32, #tpu.memory_space<vmem>>, vector<1x8x1x256xf32>
    %93 = vector.shape_cast %92 : vector<1x8x1x256xf32> to vector<8x256xf32>
    %94 = arith.mulf %93, %91 : vector<8x256xf32>
    %95 = arith.addf %89, %94 : vector<8x256xf32>
    %c0_96 = arith.constant 0 : index
    %c0_97 = arith.constant 0 : index
    %c0_98 = arith.constant 0 : index
    %c66 = arith.constant 66 : index
    %96 = vector.load %arg3[%c0_96, %c0_97, %c0_98, %c66] : memref<1x1x8x324xf32, #tpu.memory_space<vmem>>, vector<1x1x8x256xf32>
    %97 = vector.shape_cast %96 : vector<1x1x8x256xf32> to vector<8x256xf32>
    %c0_99 = arith.constant 0 : index
    %c0_100 = arith.constant 0 : index
    %c22 = arith.constant 22 : index
    %c0_101 = arith.constant 0 : index
    %98 = vector.load %arg4[%c0_99, %c0_100, %c22, %c0_101] : memref<1x8x25x256xf32, #tpu.memory_space<vmem>>, vector<1x8x1x256xf32>
    %99 = vector.shape_cast %98 : vector<1x8x1x256xf32> to vector<8x256xf32>
    %100 = arith.mulf %99, %97 : vector<8x256xf32>
    %101 = arith.addf %95, %100 : vector<8x256xf32>
    %c2_102 = arith.constant 2 : index
    %c0_103 = arith.constant 0 : index
    %102 = vector.load %arg2[%c2_102, %c0_103] : memref<5x256xf32, #tpu.memory_space<vmem>>, vector<1x256xf32>
    %103 = vector.broadcast %102 : vector<1x256xf32> to vector<8x256xf32>
    %104 = arith.mulf %103, %101 : vector<8x256xf32>
    %105 = arith.addf %70, %104 : vector<8x256xf32>
    %cst_104 = arith.constant 0.000000e+00 : f32
    %106 = vector.broadcast %cst_104 : f32 to vector<8x256xf32>
    %c0_105 = arith.constant 0 : index
    %c0_106 = arith.constant 0 : index
    %c0_107 = arith.constant 0 : index
    %c3 = arith.constant 3 : index
    %107 = vector.load %arg3[%c0_105, %c0_106, %c0_107, %c3] : memref<1x1x8x324xf32, #tpu.memory_space<vmem>>, vector<1x1x8x256xf32>
    %108 = vector.shape_cast %107 : vector<1x1x8x256xf32> to vector<8x256xf32>
    %c0_108 = arith.constant 0 : index
    %c0_109 = arith.constant 0 : index
    %c3_110 = arith.constant 3 : index
    %c0_111 = arith.constant 0 : index
    %109 = vector.load %arg4[%c0_108, %c0_109, %c3_110, %c0_111] : memref<1x8x25x256xf32, #tpu.memory_space<vmem>>, vector<1x8x1x256xf32>
    %110 = vector.shape_cast %109 : vector<1x8x1x256xf32> to vector<8x256xf32>
    %111 = arith.mulf %110, %108 : vector<8x256xf32>
    %112 = arith.addf %106, %111 : vector<8x256xf32>
    %c0_112 = arith.constant 0 : index
    %c0_113 = arith.constant 0 : index
    %c0_114 = arith.constant 0 : index
    %c19 = arith.constant 19 : index
    %113 = vector.load %arg3[%c0_112, %c0_113, %c0_114, %c19] : memref<1x1x8x324xf32, #tpu.memory_space<vmem>>, vector<1x1x8x256xf32>
    %114 = vector.shape_cast %113 : vector<1x1x8x256xf32> to vector<8x256xf32>
    %c0_115 = arith.constant 0 : index
    %c0_116 = arith.constant 0 : index
    %c8 = arith.constant 8 : index
    %c0_117 = arith.constant 0 : index
    %115 = vector.load %arg4[%c0_115, %c0_116, %c8, %c0_117] : memref<1x8x25x256xf32, #tpu.memory_space<vmem>>, vector<1x8x1x256xf32>
    %116 = vector.shape_cast %115 : vector<1x8x1x256xf32> to vector<8x256xf32>
    %117 = arith.mulf %116, %114 : vector<8x256xf32>
    %118 = arith.addf %112, %117 : vector<8x256xf32>
    %c0_118 = arith.constant 0 : index
    %c0_119 = arith.constant 0 : index
    %c0_120 = arith.constant 0 : index
    %c35 = arith.constant 35 : index
    %119 = vector.load %arg3[%c0_118, %c0_119, %c0_120, %c35] : memref<1x1x8x324xf32, #tpu.memory_space<vmem>>, vector<1x1x8x256xf32>
    %120 = vector.shape_cast %119 : vector<1x1x8x256xf32> to vector<8x256xf32>
    %c0_121 = arith.constant 0 : index
    %c0_122 = arith.constant 0 : index
    %c13 = arith.constant 13 : index
    %c0_123 = arith.constant 0 : index
    %121 = vector.load %arg4[%c0_121, %c0_122, %c13, %c0_123] : memref<1x8x25x256xf32, #tpu.memory_space<vmem>>, vector<1x8x1x256xf32>
    %122 = vector.shape_cast %121 : vector<1x8x1x256xf32> to vector<8x256xf32>
    %123 = arith.mulf %122, %120 : vector<8x256xf32>
    %124 = arith.addf %118, %123 : vector<8x256xf32>
    %c0_124 = arith.constant 0 : index
    %c0_125 = arith.constant 0 : index
    %c0_126 = arith.constant 0 : index
    %c51 = arith.constant 51 : index
    %125 = vector.load %arg3[%c0_124, %c0_125, %c0_126, %c51] : memref<1x1x8x324xf32, #tpu.memory_space<vmem>>, vector<1x1x8x256xf32>
    %126 = vector.shape_cast %125 : vector<1x1x8x256xf32> to vector<8x256xf32>
    %c0_127 = arith.constant 0 : index
    %c0_128 = arith.constant 0 : index
    %c18_129 = arith.constant 18 : index
    %c0_130 = arith.constant 0 : index
    %127 = vector.load %arg4[%c0_127, %c0_128, %c18_129, %c0_130] : memref<1x8x25x256xf32, #tpu.memory_space<vmem>>, vector<1x8x1x256xf32>
    %128 = vector.shape_cast %127 : vector<1x8x1x256xf32> to vector<8x256xf32>
    %129 = arith.mulf %128, %126 : vector<8x256xf32>
    %130 = arith.addf %124, %129 : vector<8x256xf32>
    %c0_131 = arith.constant 0 : index
    %c0_132 = arith.constant 0 : index
    %c0_133 = arith.constant 0 : index
    %c67 = arith.constant 67 : index
    %131 = vector.load %arg3[%c0_131, %c0_132, %c0_133, %c67] : memref<1x1x8x324xf32, #tpu.memory_space<vmem>>, vector<1x1x8x256xf32>
    %132 = vector.shape_cast %131 : vector<1x1x8x256xf32> to vector<8x256xf32>
    %c0_134 = arith.constant 0 : index
    %c0_135 = arith.constant 0 : index
    %c23 = arith.constant 23 : index
    %c0_136 = arith.constant 0 : index
    %133 = vector.load %arg4[%c0_134, %c0_135, %c23, %c0_136] : memref<1x8x25x256xf32, #tpu.memory_space<vmem>>, vector<1x8x1x256xf32>
    %134 = vector.shape_cast %133 : vector<1x8x1x256xf32> to vector<8x256xf32>
    %135 = arith.mulf %134, %132 : vector<8x256xf32>
    %136 = arith.addf %130, %135 : vector<8x256xf32>
    %c3_137 = arith.constant 3 : index
    %c0_138 = arith.constant 0 : index
    %137 = vector.load %arg2[%c3_137, %c0_138] : memref<5x256xf32, #tpu.memory_space<vmem>>, vector<1x256xf32>
    %138 = vector.broadcast %137 : vector<1x256xf32> to vector<8x256xf32>
    %139 = arith.mulf %138, %136 : vector<8x256xf32>
    %140 = arith.addf %105, %139 : vector<8x256xf32>
    %cst_139 = arith.constant 0.000000e+00 : f32
    %141 = vector.broadcast %cst_139 : f32 to vector<8x256xf32>
    %c0_140 = arith.constant 0 : index
    %c0_141 = arith.constant 0 : index
    %c0_142 = arith.constant 0 : index
    %c4 = arith.constant 4 : index
    %142 = vector.load %arg3[%c0_140, %c0_141, %c0_142, %c4] : memref<1x1x8x324xf32, #tpu.memory_space<vmem>>, vector<1x1x8x256xf32>
    %143 = vector.shape_cast %142 : vector<1x1x8x256xf32> to vector<8x256xf32>
    %c0_143 = arith.constant 0 : index
    %c0_144 = arith.constant 0 : index
    %c4_145 = arith.constant 4 : index
    %c0_146 = arith.constant 0 : index
    %144 = vector.load %arg4[%c0_143, %c0_144, %c4_145, %c0_146] : memref<1x8x25x256xf32, #tpu.memory_space<vmem>>, vector<1x8x1x256xf32>
    %145 = vector.shape_cast %144 : vector<1x8x1x256xf32> to vector<8x256xf32>
    %146 = arith.mulf %145, %143 : vector<8x256xf32>
    %147 = arith.addf %141, %146 : vector<8x256xf32>
    %c0_147 = arith.constant 0 : index
    %c0_148 = arith.constant 0 : index
    %c0_149 = arith.constant 0 : index
    %c20_150 = arith.constant 20 : index
    %148 = vector.load %arg3[%c0_147, %c0_148, %c0_149, %c20_150] : memref<1x1x8x324xf32, #tpu.memory_space<vmem>>, vector<1x1x8x256xf32>
    %149 = vector.shape_cast %148 : vector<1x1x8x256xf32> to vector<8x256xf32>
    %c0_151 = arith.constant 0 : index
    %c0_152 = arith.constant 0 : index
    %c9 = arith.constant 9 : index
    %c0_153 = arith.constant 0 : index
    %150 = vector.load %arg4[%c0_151, %c0_152, %c9, %c0_153] : memref<1x8x25x256xf32, #tpu.memory_space<vmem>>, vector<1x8x1x256xf32>
    %151 = vector.shape_cast %150 : vector<1x8x1x256xf32> to vector<8x256xf32>
    %152 = arith.mulf %151, %149 : vector<8x256xf32>
    %153 = arith.addf %147, %152 : vector<8x256xf32>
    %c0_154 = arith.constant 0 : index
    %c0_155 = arith.constant 0 : index
    %c0_156 = arith.constant 0 : index
    %c36 = arith.constant 36 : index
    %154 = vector.load %arg3[%c0_154, %c0_155, %c0_156, %c36] : memref<1x1x8x324xf32, #tpu.memory_space<vmem>>, vector<1x1x8x256xf32>
    %155 = vector.shape_cast %154 : vector<1x1x8x256xf32> to vector<8x256xf32>
    %c0_157 = arith.constant 0 : index
    %c0_158 = arith.constant 0 : index
    %c14 = arith.constant 14 : index
    %c0_159 = arith.constant 0 : index
    %156 = vector.load %arg4[%c0_157, %c0_158, %c14, %c0_159] : memref<1x8x25x256xf32, #tpu.memory_space<vmem>>, vector<1x8x1x256xf32>
    %157 = vector.shape_cast %156 : vector<1x8x1x256xf32> to vector<8x256xf32>
    %158 = arith.mulf %157, %155 : vector<8x256xf32>
    %159 = arith.addf %153, %158 : vector<8x256xf32>
    %c0_160 = arith.constant 0 : index
    %c0_161 = arith.constant 0 : index
    %c0_162 = arith.constant 0 : index
    %c52 = arith.constant 52 : index
    %160 = vector.load %arg3[%c0_160, %c0_161, %c0_162, %c52] : memref<1x1x8x324xf32, #tpu.memory_space<vmem>>, vector<1x1x8x256xf32>
    %161 = vector.shape_cast %160 : vector<1x1x8x256xf32> to vector<8x256xf32>
    %c0_163 = arith.constant 0 : index
    %c0_164 = arith.constant 0 : index
    %c19_165 = arith.constant 19 : index
    %c0_166 = arith.constant 0 : index
    %162 = vector.load %arg4[%c0_163, %c0_164, %c19_165, %c0_166] : memref<1x8x25x256xf32, #tpu.memory_space<vmem>>, vector<1x8x1x256xf32>
    %163 = vector.shape_cast %162 : vector<1x8x1x256xf32> to vector<8x256xf32>
    %164 = arith.mulf %163, %161 : vector<8x256xf32>
    %165 = arith.addf %159, %164 : vector<8x256xf32>
    %c0_167 = arith.constant 0 : index
    %c0_168 = arith.constant 0 : index
    %c0_169 = arith.constant 0 : index
    %c68 = arith.constant 68 : index
    %166 = vector.load %arg3[%c0_167, %c0_168, %c0_169, %c68] : memref<1x1x8x324xf32, #tpu.memory_space<vmem>>, vector<1x1x8x256xf32>
    %167 = vector.shape_cast %166 : vector<1x1x8x256xf32> to vector<8x256xf32>
    %c0_170 = arith.constant 0 : index
    %c0_171 = arith.constant 0 : index
    %c24 = arith.constant 24 : index
    %c0_172 = arith.constant 0 : index
    %168 = vector.load %arg4[%c0_170, %c0_171, %c24, %c0_172] : memref<1x8x25x256xf32, #tpu.memory_space<vmem>>, vector<1x8x1x256xf32>
    %169 = vector.shape_cast %168 : vector<1x8x1x256xf32> to vector<8x256xf32>
    %170 = arith.mulf %169, %167 : vector<8x256xf32>
    %171 = arith.addf %165, %170 : vector<8x256xf32>
    %c4_173 = arith.constant 4 : index
    %c0_174 = arith.constant 0 : index
    %172 = vector.load %arg2[%c4_173, %c0_174] : memref<5x256xf32, #tpu.memory_space<vmem>>, vector<1x256xf32>
    %173 = vector.broadcast %172 : vector<1x256xf32> to vector<8x256xf32>
    %174 = arith.mulf %173, %171 : vector<8x256xf32>
    %175 = arith.addf %140, %174 : vector<8x256xf32>
    %c0_175 = arith.constant 0 : index
    %c0_176 = arith.constant 0 : index
    %c0_177 = arith.constant 0 : index
    %176 = vector.load %arg5[%c0_175, %c0_176, %c0_177] : memref<1x8x256xf32, #tpu.memory_space<vmem>>, vector<1x8x256xf32>
    %177 = vector.shape_cast %176 : vector<1x8x256xf32> to vector<8x256xf32>
    %178 = arith.mulf %177, %175 : vector<8x256xf32>
    %c0_178 = arith.constant 0 : index
    %c0_179 = arith.constant 0 : index
    %c0_180 = arith.constant 0 : index
    %179 = vector.load %arg6[%c0_178, %c0_179, %c0_180] : memref<1x8x256xf32, #tpu.memory_space<vmem>>, vector<1x8x256xf32>
    %180 = vector.shape_cast %179 : vector<1x8x256xf32> to vector<8x256xf32>
    %181 = vector.shape_cast %178 : vector<8x256xf32> to vector<1x8x256xf32>
    tpu.vector_store %arg6[%c0_178, %c0_179, %c0_180], %181 {strides = array<i32>} : memref<1x8x256xf32, #tpu.memory_space<vmem>>, vector<1x8x256xf32>,
    return
  }
  func.func @transform_0(%arg0: i32, %arg1: i32) -> (i32, i32) {
    %c0_i32 = arith.constant 0 : i32
    %c0_i32_0 = arith.constant 0 : i32
    return %c0_i32, %arg1 : i32, i32
  }
  func.func @transform_1(%arg0: i32, %arg1: i32) -> (i32, i32, i32, i32) {
    %c0_i32 = arith.constant 0 : i32
    %c0_i32_0 = arith.constant 0 : i32
    %c0_i32_1 = arith.constant 0 : i32
    return %arg1, %arg0, %c0_i32, %c0_i32_0 : i32, i32, i32, i32
  }
  func.func @transform_2(%arg0: i32, %arg1: i32) -> (i32, i32, i32, i32) {
    %c0_i32 = arith.constant 0 : i32
    %c0_i32_0 = arith.constant 0 : i32
    %c0_i32_1 = arith.constant 0 : i32
    return %arg0, %c0_i32, %c0_i32_0, %arg1 : i32, i32, i32, i32
  }
  func.func @transform_3(%arg0: i32, %arg1: i32) -> (i32, i32, i32) {
    %c0_i32 = arith.constant 0 : i32
    %c0_i32_0 = arith.constant 0 : i32
    return %arg0, %c0_i32, %arg1 : i32, i32, i32
  }
  func.func @transform_4(%arg0: i32, %arg1: i32) -> (i32, i32, i32) {
    %c0_i32 = arith.constant 0 : i32
    %c0_i32_0 = arith.constant 0 : i32
    return %arg0, %c0_i32, %arg1 : i32, i32, i32
  }
}

</mosaic_0001>

<llo_original>
// kernel: tpu_custom_call.1
$region0: #{tpu_custom_call.1}
  #allocation0 [shape = 'u32[]', space=smem, size = 0x4, offset = 0x4, fixed_abs, tag = 'smem constant byte address 0x4 - core index']
  #allocation1 [shape = 'u32[144,128]{1,0:T(1,128)}', space=vmem, size = 0x12000, scoped, tag = 'internal scratch']
  %s0 = inlined_call_operand.vmem [shape: f32[5,256], index: 0, kind: input, shape index: {}]
  %s1 = inlined_call_operand.vmem [shape: f32[1,1,8,324], index: 1, kind: input, shape index: {}]
  %s2 = inlined_call_operand.vmem [shape: f32[1,8,25,256], index: 2, kind: input, shape index: {}]
  %s3 = inlined_call_operand.vmem [shape: f32[1,8,256], index: 3, kind: input, shape index: {}]
  %s4 = inlined_call_operand.hbm [shape: f32[1,8,256], index: 4, kind: output, shape index: {}]
  %s5 = sld [smem:[#allocation0]]
  $region26: #{tpu_custom_call.1} parent=0
    _
  %s7 = ssub.s32 1, %s5
  %s8 = scalar_select 0, %s7, %s5
  $region1: #{tpu_custom_call.1} parent=0
    #allocation2 [shape = 'u8[8192]{0}', space=vmem, size = 0x2000, scoped, tag = 'output window, operand 0, single buffered']
    #allocation3 [shape = 's32[1]{0}', space=sflag, size = 0x4, scoped, tag = 'scoped memory for tpu_custom_call.1']
    %9 = vsyncpa [#allocation3], 0
    // Predicated region
    $region2: #{tpu_custom_call.1} parent=1 // pred_check
      _
    $region3: #{tpu_custom_call.1} parent=1 // pred_check_branch
      %11 = sbr.rel (0) target = $region5
    $region4: #{tpu_custom_call.1} parent=1 // pred_region
      _
    $region5: #{tpu_custom_call.1} parent=1 // pred_fallthru
      _
    // Predicated region
    $region6: #{tpu_custom_call.1} parent=1 // pred_check
      _
    $region7: #{tpu_custom_call.1} parent=1 // pred_check_branch
      %13 = sbr.rel (0) target = $region9
    $region8: #{tpu_custom_call.1} parent=1 // pred_region
      _
    $region9: #{tpu_custom_call.1} parent=1 // pred_fallthru
      _
    // Predicated region
    $region10: #{tpu_custom_call.1} parent=1 // pred_check
      _
    $region11: #{tpu_custom_call.1} parent=1 // pred_check_branch
      %15 = sbr.rel (0) target = $region13
    $region12: #{tpu_custom_call.1} parent=1 // pred_region
      _
    $region13: #{tpu_custom_call.1} parent=1 // pred_fallthru
      _
    // Predicated region
    $region14: #{tpu_custom_call.1} parent=1 // pred_check
      _
    $region15: #{tpu_custom_call.1} parent=1 // pred_check_branch
      %17 = sbr.rel (0) target = $region17
    $region16: #{tpu_custom_call.1} parent=1 // pred_region
      _
    $region17: #{tpu_custom_call.1} parent=1 // pred_fallthru
      _
    %v18 = vld [vmem:[%s1] sm:$0xff]
    %v19 = vld [vmem:[%s1 + $0x8] sm:$0xff]
    %v20 = vld [vmem:[%s2] ss:$8 sm:$0x3]
    %s21 = scalar_lea.vmem %s2, 64
    %v22 = vld [vmem:[%s21] ss:$8 sm:$0x3]
    %s23 = scalar_lea.vmem %s2, 128
    %v24 = vld [vmem:[%s23] ss:$8 sm:$0x3]
    %s25 = scalar_lea.vmem %s2, 192
    %v26 = vld [vmem:[%s25] ss:$8 sm:$0x3]
    %s27 = scalar_lea.vmem %s2, 256
    %v28 = vld [vmem:[%s27] ss:$8 sm:$0x3]
    %s29 = scalar_lea.vmem %s2, 320
    %v30 = vld [vmem:[%s29] ss:$8 sm:$0x3]
    %s31 = scalar_lea.vmem %s2, 384
    %v32 = vld [vmem:[%s31] ss:$8 sm:$0x3]
    %s33 = scalar_lea.vmem %s2, 448
    %v34 = vld [vmem:[%s33] ss:$8 sm:$0x3]
    %v37 = vcombine.low %v18, %v19
    %v38 = vcombine.high %v18, %v19
    %v40 = vunpack.c.l.s4 1966171168
    %v41 = vunpack.c.0.s8 %v40
    %v42 = vlaneseq
    %v43 = vshrl.u32 %v42, 7
    %v44 = vsub.s32 %v41, %v43
    %v45 = vrot.slane %v37, %v44
    %v47 = vunpack.c.l.s4 1966171168
    %v48 = vunpack.c.0.s8 %v47
    %v49 = vlaneseq
    %v50 = vshrl.u32 %v49, 7
    %v51 = vsub.s32 %v48, %v50
    %v52 = vrot.slane %v38, %v51
    %v53 = vcombine.high %v45, %v45
    %v54 = vcombine.high %v52, %v52
    %v56 = vunpack.c.l.s4 1966171168
    %v57 = vunpack.c.0.s8 %v56
    %v58 = vlaneseq
    %v59 = vshrl.u32 %v58, 7
    %v60 = vsub.s32 %v57, %v59
    %v61 = vrot.slane %v45, %v60
    %v63 = vunpack.c.l.s4 1966171168
    %v64 = vunpack.c.0.s8 %v63
    %v65 = vlaneseq
    %v66 = vshrl.u32 %v65, 7
    %v67 = vsub.s32 %v64, %v66
    %v68 = vrot.slane %v52, %v67
    %v70 = vunpack.c.l.s4 1966171168
    %v71 = vunpack.c.0.s8 %v70
    %v72 = vlaneseq
    %v73 = vshrl.u32 %v72, 7
    %v74 = vsub.s32 %v71, %v73
    %v75 = vrot.slane %v53, %v74
    %v77 = vunpack.c.l.s4 1966171168
    %v78 = vunpack.c.0.s8 %v77
    %v79 = vlaneseq
    %v80 = vshrl.u32 %v79, 7
    %v81 = vsub.s32 %v78, %v80
    %v82 = vrot.slane %v54, %v81
    %v83 = vcombine.high %v61, %v61
    %v84 = vcombine.high %v68, %v68
    %v85 = vcombine.high %v75, %v75
    %v86 = vcombine.high %v82, %v82
    %v95 = vmul.f32 %v20, %v61
    %v96 = vmul.f32 %v22, %v75
    %v97 = vmul.f32 %v24, %v83
    %v98 = vmul.f32 %v26, %v85
    %v99 = vmul.f32 %v28, %v68
    %v100 = vmul.f32 %v30, %v82
    %v101 = vmul.f32 %v32, %v84
    %v102 = vmul.f32 %v34, %v86
    %v103 = vadd.f32 %v95, 0.0
    %v104 = vadd.f32 %v96, 0.0
    %v105 = vadd.f32 %v97, 0.0
    %v106 = vadd.f32 %v98, 0.0
    %v107 = vadd.f32 %v99, 0.0
    %v108 = vadd.f32 %v100, 0.0
    %v109 = vadd.f32 %v101, 0.0
    %v110 = vadd.f32 %v102, 0.0
    %v111 = vld [vmem:[%s1 + $0x10] sm:$0xff]
    %s112 = scalar_lea.vmem %s2, 5
    %v113 = vld [vmem:[%s112] ss:$8 sm:$0x3]
    %s114 = scalar_lea.vmem %s2, 69
    %v115 = vld [vmem:[%s114] ss:$8 sm:$0x3]
    %s116 = scalar_lea.vmem %s2, 133
    %v117 = vld [vmem:[%s116] ss:$8 sm:$0x3]
    %s118 = scalar_lea.vmem %s2, 197
    %v119 = vld [vmem:[%s118] ss:$8 sm:$0x3]
    %s120 = scalar_lea.vmem %s2, 261
    %v121 = vld [vmem:[%s120] ss:$8 sm:$0x3]
    %s122 = scalar_lea.vmem %s2, 325
    %v123 = vld [vmem:[%s122] ss:$8 sm:$0x3]
    %s124 = scalar_lea.vmem %s2, 389
    %v125 = vld [vmem:[%s124] ss:$8 sm:$0x3]
    %s126 = scalar_lea.vmem %s2, 453
    %v127 = vld [vmem:[%s126] ss:$8 sm:$0x3]
    %v129 = vcombine.high %v111, %v111
    %v131 = vunpack.c.l.s4 1966171168
    %v132 = vunpack.c.0.s8 %v131
    %v133 = vlaneseq
    %v134 = vshrl.u32 %v133, 7
    %v135 = vsub.s32 %v132, %v134
    %v136 = vrot.slane %v111, %v135
    %v138 = vunpack.c.l.s4 1966171168
    %v139 = vunpack.c.0.s8 %v138
    %v140 = vlaneseq
    %v141 = vshrl.u32 %v140, 7
    %v142 = vsub.s32 %v139, %v141
    %v143 = vrot.slane %v129, %v142
    %v144 = vcombine.low %v45, %v136
    %v145 = vcombine.high %v45, %v136
    %v146 = vcombine.low %v52, %v143
    %v147 = vcombine.high %v52, %v143
    %v149 = vunpack.c.l.s4 1966171168
    %v150 = vunpack.c.0.s8 %v149
    %v151 = vlaneseq
    %v152 = vshrl.u32 %v151, 7
    %v153 = vsub.s32 %v150, %v152
    %v154 = vrot.slane %v144, %v153
    %v156 = vunpack.c.l.s4 1966171168
    %v157 = vunpack.c.0.s8 %v156
    %v158 = vlaneseq
    %v159 = vshrl.u32 %v158, 7
    %v160 = vsub.s32 %v157, %v159
    %v161 = vrot.slane %v146, %v160
    %v163 = vunpack.c.l.s4 1966171168
    %v164 = vunpack.c.0.s8 %v163
    %v165 = vlaneseq
    %v166 = vshrl.u32 %v165, 7
    %v167 = vsub.s32 %v164, %v166
    %v168 = vrot.slane %v145, %v167
    %v170 = vunpack.c.l.s4 1966171168
    %v171 = vunpack.c.0.s8 %v170
    %v172 = vlaneseq
    %v173 = vshrl.u32 %v172, 7
    %v174 = vsub.s32 %v171, %v173
    %v175 = vrot.slane %v147, %v174
    %v176 = vcombine.high %v154, %v154
    %v177 = vcombine.high %v161, %v161
    %v178 = vcombine.high %v168, %v168
    %v179 = vcombine.high %v175, %v175
    %180 = vrot.lane.b32.xlu0 %v154, 112
    %v181 = vpop.permute.xlu0 %180
    %182 = vrot.lane.b32.xlu0 %v168, 112
    %v183 = vpop.permute.xlu0 %182
    %184 = vrot.lane.b32.xlu0 %v176, 112
    %v185 = vpop.permute.xlu0 %184
    %186 = vrot.lane.b32.xlu0 %v178, 112
    %v187 = vpop.permute.xlu0 %186
    %188 = vrot.lane.b32.xlu0 %v161, 112
    %v189 = vpop.permute.xlu0 %188
    %190 = vrot.lane.b32.xlu0 %v175, 112
    %v191 = vpop.permute.xlu0 %190
    %192 = vrot.lane.b32.xlu0 %v177, 112
    %v193 = vpop.permute.xlu0 %192
    %194 = vrot.lane.b32.xlu0 %v179, 112
    %v195 = vpop.permute.xlu0 %194
    %v196 = vrot.slane %v181, 1
    %v197 = vrot.slane %v183, 1
    %v198 = vrot.slane %v185, 1
    %v199 = vrot.slane %v187, 1
    %v200 = vrot.slane %v189, 1
    %v201 = vrot.slane %v191, 1
    %v202 = vrot.slane %v193, 1
    %v203 = vrot.slane %v195, 1
    %vm204 = vcmask 916480
    %v205 = vsel %vm204, %v181, %v196
    %v206 = vsel %vm204, %v183, %v197
    %v207 = vsel %vm204, %v185, %v198
    %v208 = vsel %vm204, %v187, %v199
    %v209 = vsel %vm204, %v189, %v200
    %v210 = vsel %vm204, %v191, %v201
    %v211 = vsel %vm204, %v193, %v202
    %v212 = vsel %vm204, %v195, %v203
    %v221 = vmul.f32 %v113, %v205
    %v222 = vmul.f32 %v115, %v206
    %v223 = vmul.f32 %v117, %v207
    %v224 = vmul.f32 %v119, %v208
    %v225 = vmul.f32 %v121, %v209
    %v226 = vmul.f32 %v123, %v210
    %v227 = vmul.f32 %v125, %v211
    %v228 = vmul.f32 %v127, %v212
    %v229 = vadd.f32 %v103, %v221
    %v230 = vadd.f32 %v104, %v222
    %v231 = vadd.f32 %v105, %v223
    %v232 = vadd.f32 %v106, %v224
    %v233 = vadd.f32 %v107, %v225
    %v234 = vadd.f32 %v108, %v226
    %v235 = vadd.f32 %v109, %v227
    %v236 = vadd.f32 %v110, %v228
    %s237 = scalar_lea.vmem %s2, 18
    %v238 = vld [vmem:[%s237] ss:$8 sm:$0x3]
    %s239 = scalar_lea.vmem %s2, 82
    %v240 = vld [vmem:[%s239] ss:$8 sm:$0x3]
    %s241 = scalar_lea.vmem %s2, 146
    %v242 = vld [vmem:[%s241] ss:$8 sm:$0x3]
    %s243 = scalar_lea.vmem %s2, 210
    %v244 = vld [vmem:[%s243] ss:$8 sm:$0x3]
    %s245 = scalar_lea.vmem %s2, 274
    %v246 = vld [vmem:[%s245] ss:$8 sm:$0x3]
    %s247 = scalar_lea.vmem %s2, 338
    %v248 = vld [vmem:[%s247] ss:$8 sm:$0x3]
    %s249 = scalar_lea.vmem %s2, 402
    %v250 = vld [vmem:[%s249] ss:$8 sm:$0x3]
    %s251 = scalar_lea.vmem %s2, 466
    %v252 = vld [vmem:[%s251] ss:$8 sm:$0x3]
    %253 = vrot.lane.b32.xlu0 %v154, 96
    %v254 = vpop.permute.xlu0 %253
    %255 = vrot.lane.b32.xlu0 %v168, 96
    %v256 = vpop.permute.xlu0 %255
    %257 = vrot.lane.b32.xlu0 %v176, 96
    %v258 = vpop.permute.xlu0 %257
    %259 = vrot.lane.b32.xlu0 %v178, 96
    %v260 = vpop.permute.xlu0 %259
    %261 = vrot.lane.b32.xlu0 %v161, 96
    %v262 = vpop.permute.xlu0 %261
    %263 = vrot.lane.b32.xlu0 %v175, 96
    %v264 = vpop.permute.xlu0 %263
    %265 = vrot.lane.b32.xlu0 %v177, 96
    %v266 = vpop.permute.xlu0 %265
    %267 = vrot.lane.b32.xlu0 %v179, 96
    %v268 = vpop.permute.xlu0 %267
    %v269 = vrot.slane %v254, 1
    %v270 = vrot.slane %v256, 1
    %v271 = vrot.slane %v258, 1
    %v272 = vrot.slane %v260, 1
    %v273 = vrot.slane %v262, 1
    %v274 = vrot.slane %v264, 1
    %v275 = vrot.slane %v266, 1
    %v276 = vrot.slane %v268, 1
    %vm277 = vcmask 785408
    %v278 = vsel %vm277, %v254, %v269
    %v279 = vsel %vm277, %v256, %v270
    %v280 = vsel %vm277, %v258, %v271
    %v281 = vsel %vm277, %v260, %v272
    %v282 = vsel %vm277, %v262, %v273
    %v283 = vsel %vm277, %v264, %v274
    %v284 = vsel %vm277, %v266, %v275
    %v285 = vsel %vm277, %v268, %v276
    %v294 = vmul.f32 %v238, %v278
    %v295 = vmul.f32 %v240, %v279
    %v296 = vmul.f32 %v242, %v280
    %v297 = vmul.f32 %v244, %v281
    %v298 = vmul.f32 %v246, %v282
    %v299 = vmul.f32 %v248, %v283
    %v300 = vmul.f32 %v250, %v284
    %v301 = vmul.f32 %v252, %v285
    %v302 = vadd.f32 %v229, %v294
    %v303 = vadd.f32 %v230, %v295
    %v304 = vadd.f32 %v231, %v296
    %v305 = vadd.f32 %v232, %v297
    %v306 = vadd.f32 %v233, %v298
    %v307 = vadd.f32 %v234, %v299
    %v308 = vadd.f32 %v235, %v300
    %v309 = vadd.f32 %v236, %v301
    %s310 = scalar_lea.vmem %s2, 23
    %v311 = vld [vmem:[%s310] ss:$8 sm:$0x3]
    %s312 = scalar_lea.vmem %s2, 87
    %v313 = vld [vmem:[%s312] ss:$8 sm:$0x3]
    %s314 = scalar_lea.vmem %s2, 151
    %v315 = vld [vmem:[%s314] ss:$8 sm:$0x3]
    %s316 = scalar_lea.vmem %s2, 215
    %v317 = vld [vmem:[%s316] ss:$8 sm:$0x3]
    %s318 = scalar_lea.vmem %s2, 279
    %v319 = vld [vmem:[%s318] ss:$8 sm:$0x3]
    %s320 = scalar_lea.vmem %s2, 343
    %v321 = vld [vmem:[%s320] ss:$8 sm:$0x3]
    %s322 = scalar_lea.vmem %s2, 407
    %v323 = vld [vmem:[%s322] ss:$8 sm:$0x3]
    %s324 = scalar_lea.vmem %s2, 471
    %v325 = vld [vmem:[%s324] ss:$8 sm:$0x3]
    %326 = vrot.lane.b32.xlu0 %v154, 80
    %v327 = vpop.permute.xlu0 %326
    %328 = vrot.lane.b32.xlu0 %v168, 80
    %v329 = vpop.permute.xlu0 %328
    %330 = vrot.lane.b32.xlu0 %v176, 80
    %v331 = vpop.permute.xlu0 %330
    %332 = vrot.lane.b32.xlu0 %v178, 80
    %v333 = vpop.permute.xlu0 %332
    %334 = vrot.lane.b32.xlu0 %v161, 80
    %v335 = vpop.permute.xlu0 %334
    %336 = vrot.lane.b32.xlu0 %v175, 80
    %v337 = vpop.permute.xlu0 %336
    %338 = vrot.lane.b32.xlu0 %v177, 80
    %v339 = vpop.permute.xlu0 %338
    %340 = vrot.lane.b32.xlu0 %v179, 80
    %v341 = vpop.permute.xlu0 %340
    %v342 = vrot.slane %v327, 1
    %v343 = vrot.slane %v329, 1
    %v344 = vrot.slane %v331, 1
    %v345 = vrot.slane %v333, 1
    %v346 = vrot.slane %v335, 1
    %v347 = vrot.slane %v337, 1
    %v348 = vrot.slane %v339, 1
    %v349 = vrot.slane %v341, 1
    %vm350 = vcmask 654336
    %v351 = vsel %vm350, %v327, %v342
    %v352 = vsel %vm350, %v329, %v343
    %v353 = vsel %vm350, %v331, %v344
    %v354 = vsel %vm350, %v333, %v345
    %v355 = vsel %vm350, %v335, %v346
    %v356 = vsel %vm350, %v337, %v347
    %v357 = vsel %vm350, %v339, %v348
    %v358 = vsel %vm350, %v341, %v349
    %v367 = vmul.f32 %v311, %v351
    %v368 = vmul.f32 %v313, %v352
    %v369 = vmul.f32 %v315, %v353
    %v370 = vmul.f32 %v317, %v354
    %v371 = vmul.f32 %v319, %v355
    %v372 = vmul.f32 %v321, %v356
    %v373 = vmul.f32 %v323, %v357
    %v374 = vmul.f32 %v325, %v358
    %v375 = vadd.f32 %v302, %v367
    %v376 = vadd.f32 %v303, %v368
    %v377 = vadd.f32 %v304, %v369
    %v378 = vadd.f32 %v305, %v370
    %v379 = vadd.f32 %v306, %v371
    %v380 = vadd.f32 %v307, %v372
    %v381 = vadd.f32 %v308, %v373
    %v382 = vadd.f32 %v309, %v374
    %s383 = scalar_lea.vmem %s2, 36
    %v384 = vld [vmem:[%s383] ss:$8 sm:$0x3]
    %s385 = scalar_lea.vmem %s2, 100
    %v386 = vld [vmem:[%s385] ss:$8 sm:$0x3]
    %s387 = scalar_lea.vmem %s2, 164
    %v388 = vld [vmem:[%s387] ss:$8 sm:$0x3]
    %s389 = scalar_lea.vmem %s2, 228
    %v390 = vld [vmem:[%s389] ss:$8 sm:$0x3]
    %s391 = scalar_lea.vmem %s2, 292
    %v392 = vld [vmem:[%s391] ss:$8 sm:$0x3]
    %s393 = scalar_lea.vmem %s2, 356
    %v394 = vld [vmem:[%s393] ss:$8 sm:$0x3]
    %s395 = scalar_lea.vmem %s2, 420
    %v396 = vld [vmem:[%s395] ss:$8 sm:$0x3]
    %s397 = scalar_lea.vmem %s2, 484
    %v398 = vld [vmem:[%s397] ss:$8 sm:$0x3]
    %399 = vrot.lane.b32.xlu0 %v154, 64
    %v400 = vpop.permute.xlu0 %399
    %401 = vrot.lane.b32.xlu0 %v168, 64
    %v402 = vpop.permute.xlu0 %401
    %403 = vrot.lane.b32.xlu0 %v176, 64
    %v404 = vpop.permute.xlu0 %403
    %405 = vrot.lane.b32.xlu0 %v178, 64
    %v406 = vpop.permute.xlu0 %405
    %407 = vrot.lane.b32.xlu0 %v161, 64
    %v408 = vpop.permute.xlu0 %407
    %409 = vrot.lane.b32.xlu0 %v175, 64
    %v410 = vpop.permute.xlu0 %409
    %411 = vrot.lane.b32.xlu0 %v177, 64
    %v412 = vpop.permute.xlu0 %411
    %413 = vrot.lane.b32.xlu0 %v179, 64
    %v414 = vpop.permute.xlu0 %413
    %v415 = vrot.slane %v400, 1
    %v416 = vrot.slane %v402, 1
    %v417 = vrot.slane %v404, 1
    %v418 = vrot.slane %v406, 1
    %v419 = vrot.slane %v408, 1
    %v420 = vrot.slane %v410, 1
    %v421 = vrot.slane %v412, 1
    %v422 = vrot.slane %v414, 1
    %vm423 = vcmask 523264
    %v424 = vsel %vm423, %v400, %v415
    %v425 = vsel %vm423, %v402, %v416
    %v426 = vsel %vm423, %v404, %v417
    %v427 = vsel %vm423, %v406, %v418
    %v428 = vsel %vm423, %v408, %v419
    %v429 = vsel %vm423, %v410, %v420
    %v430 = vsel %vm423, %v412, %v421
    %v431 = vsel %vm423, %v414, %v422
    %v440 = vmul.f32 %v384, %v424
    %v441 = vmul.f32 %v386, %v425
    %v442 = vmul.f32 %v388, %v426
    %v443 = vmul.f32 %v390, %v427
    %v444 = vmul.f32 %v392, %v428
    %v445 = vmul.f32 %v394, %v429
    %v446 = vmul.f32 %v396, %v430
    %v447 = vmul.f32 %v398, %v431
    %v448 = vadd.f32 %v375, %v440
    %v449 = vadd.f32 %v376, %v441
    %v450 = vadd.f32 %v377, %v442
    %v451 = vadd.f32 %v378, %v443
    %v452 = vadd.f32 %v379, %v444
    %v453 = vadd.f32 %v380, %v445
    %v454 = vadd.f32 %v381, %v446
    %v455 = vadd.f32 %v382, %v447
    %v456 = vld [vmem:[%s0] ss:$8 sm:$0x3]
    %v458 = vlaneseq
    %v459 = vshrl.u32 %v458, 7
    %v460 = vsub.s32 0, %v459
    %v461 = vrot.slane %v456, %v460
    %v462 = vlaneseq
    %v463 = vshrl.u32 %v462, 7
    %v464 = vsub.s32 1, %v463
    %v465 = vrot.slane %v456, %v464
    %v476 = vcombine.low %v448, %v449
    %v477 = vcombine.low %v450, %v451
    %v478 = vcombine.low %v452, %v453
    %v479 = vcombine.low %v454, %v455
    %v481 = vunpack.c.l.s4 1966171168
    %v482 = vunpack.c.0.s8 %v481
    %v483 = vlaneseq
    %v484 = vshrl.u32 %v483, 7
    %v485 = vsub.s32 %v482, %v484
    %v486 = vrot.slane %v476, %v485
    %v488 = vunpack.c.l.s4 1966171168
    %v489 = vunpack.c.0.s8 %v488
    %v490 = vlaneseq
    %v491 = vshrl.u32 %v490, 7
    %v492 = vsub.s32 %v489, %v491
    %v493 = vrot.slane %v477, %v492
    %v495 = vunpack.c.l.s4 1966171168
    %v496 = vunpack.c.0.s8 %v495
    %v497 = vlaneseq
    %v498 = vshrl.u32 %v497, 7
    %v499 = vsub.s32 %v496, %v498
    %v500 = vrot.slane %v478, %v499
    %v502 = vunpack.c.l.s4 1966171168
    %v503 = vunpack.c.0.s8 %v502
    %v504 = vlaneseq
    %v505 = vshrl.u32 %v504, 7
    %v506 = vsub.s32 %v503, %v505
    %v507 = vrot.slane %v479, %v506
    %v508 = vcombine.low %v486, %v493
    %v509 = vcombine.high %v486, %v493
    %v510 = vcombine.low %v500, %v507
    %v511 = vcombine.high %v500, %v507
    %v513 = vunpack.c.l.s4 1966171168
    %v514 = vunpack.c.0.s8 %v513
    %v515 = vlaneseq
    %v516 = vshrl.u32 %v515, 7
    %v517 = vsub.s32 %v514, %v516
    %v518 = vrot.slane %v508, %v517
    %v520 = vunpack.c.l.s4 1966171168
    %v521 = vunpack.c.0.s8 %v520
    %v522 = vlaneseq
    %v523 = vshrl.u32 %v522, 7
    %v524 = vsub.s32 %v521, %v523
    %v525 = vrot.slane %v509, %v524
    %v527 = vunpack.c.l.s4 1966171168
    %v528 = vunpack.c.0.s8 %v527
    %v529 = vlaneseq
    %v530 = vshrl.u32 %v529, 7
    %v531 = vsub.s32 %v528, %v530
    %v532 = vrot.slane %v510, %v531
    %v534 = vunpack.c.l.s4 1966171168
    %v535 = vunpack.c.0.s8 %v534
    %v536 = vlaneseq
    %v537 = vshrl.u32 %v536, 7
    %v538 = vsub.s32 %v535, %v537
    %v539 = vrot.slane %v511, %v538
    %v540 = vcombine.low %v518, %v532
    %v541 = vcombine.low %v525, %v539
    %v544 = vmul.f32 %v461, %v540
    %v545 = vmul.f32 %v465, %v541
    %v546 = vadd.f32 %v544, 0.0
    %v547 = vadd.f32 %v545, 0.0
    %s548 = scalar_lea.vmem %s2, 1
    %v549 = vld [vmem:[%s548] ss:$8 sm:$0x3]
    %s550 = scalar_lea.vmem %s2, 65
    %v551 = vld [vmem:[%s550] ss:$8 sm:$0x3]
    %s552 = scalar_lea.vmem %s2, 129
    %v553 = vld [vmem:[%s552] ss:$8 sm:$0x3]
    %s554 = scalar_lea.vmem %s2, 193
    %v555 = vld [vmem:[%s554] ss:$8 sm:$0x3]
    %s556 = scalar_lea.vmem %s2, 257
    %v557 = vld [vmem:[%s556] ss:$8 sm:$0x3]
    %s558 = scalar_lea.vmem %s2, 321
    %v559 = vld [vmem:[%s558] ss:$8 sm:$0x3]
    %s560 = scalar_lea.vmem %s2, 385
    %v561 = vld [vmem:[%s560] ss:$8 sm:$0x3]
    %s562 = scalar_lea.vmem %s2, 449
    %v563 = vld [vmem:[%s562] ss:$8 sm:$0x3]
    %564 = vrot.lane.b32.xlu0 %v154, 127
    %v565 = vpop.permute.xlu0 %564
    %566 = vrot.lane.b32.xlu0 %v168, 127
    %v567 = vpop.permute.xlu0 %566
    %568 = vrot.lane.b32.xlu0 %v176, 127
    %v569 = vpop.permute.xlu0 %568
    %570 = vrot.lane.b32.xlu0 %v178, 127
    %v571 = vpop.permute.xlu0 %570
    %572 = vrot.lane.b32.xlu0 %v161, 127
    %v573 = vpop.permute.xlu0 %572
    %574 = vrot.lane.b32.xlu0 %v175, 127
    %v575 = vpop.permute.xlu0 %574
    %576 = vrot.lane.b32.xlu0 %v177, 127
    %v577 = vpop.permute.xlu0 %576
    %578 = vrot.lane.b32.xlu0 %v179, 127
    %v579 = vpop.permute.xlu0 %578
    %v580 = vrot.slane %v565, 1
    %v581 = vrot.slane %v567, 1
    %v582 = vrot.slane %v569, 1
    %v583 = vrot.slane %v571, 1
    %v584 = vrot.slane %v573, 1
    %v585 = vrot.slane %v575, 1
    %v586 = vrot.slane %v577, 1
    %v587 = vrot.slane %v579, 1
    %vm588 = vcmask 1039360
    %v589 = vsel %vm588, %v565, %v580
    %v590 = vsel %vm588, %v567, %v581
    %v591 = vsel %vm588, %v569, %v582
    %v592 = vsel %vm588, %v571, %v583
    %v593 = vsel %vm588, %v573, %v584
    %v594 = vsel %vm588, %v575, %v585
    %v595 = vsel %vm588, %v577, %v586
    %v596 = vsel %vm588, %v579, %v587
    %v605 = vmul.f32 %v549, %v589
    %v606 = vmul.f32 %v551, %v590
    %v607 = vmul.f32 %v553, %v591
    %v608 = vmul.f32 %v555, %v592
    %v609 = vmul.f32 %v557, %v593
    %v610 = vmul.f32 %v559, %v594
    %v611 = vmul.f32 %v561, %v595
    %v612 = vmul.f32 %v563, %v596
    %v613 = vadd.f32 %v605, 0.0
    %v614 = vadd.f32 %v606, 0.0
    %v615 = vadd.f32 %v607, 0.0
    %v616 = vadd.f32 %v608, 0.0
    %v617 = vadd.f32 %v609, 0.0
    %v618 = vadd.f32 %v610, 0.0
    %v619 = vadd.f32 %v611, 0.0
    %v620 = vadd.f32 %v612, 0.0
    %s621 = scalar_lea.vmem %s2, 6
    %v622 = vld [vmem:[%s621] ss:$8 sm:$0x3]
    %s623 = scalar_lea.vmem %s2, 70
    %v624 = vld [vmem:[%s623] ss:$8 sm:$0x3]
    %s625 = scalar_lea.vmem %s2, 134
    %v626 = vld [vmem:[%s625] ss:$8 sm:$0x3]
    %s627 = scalar_lea.vmem %s2, 198
    %v628 = vld [vmem:[%s627] ss:$8 sm:$0x3]
    %s629 = scalar_lea.vmem %s2, 262
    %v630 = vld [vmem:[%s629] ss:$8 sm:$0x3]
    %s631 = scalar_lea.vmem %s2, 326
    %v632 = vld [vmem:[%s631] ss:$8 sm:$0x3]
    %s633 = scalar_lea.vmem %s2, 390
    %v634 = vld [vmem:[%s633] ss:$8 sm:$0x3]
    %s635 = scalar_lea.vmem %s2, 454
    %v636 = vld [vmem:[%s635] ss:$8 sm:$0x3]
    %637 = vrot.lane.b32.xlu0 %v154, 111
    %v638 = vpop.permute.xlu0 %637
    %639 = vrot.lane.b32.xlu0 %v168, 111
    %v640 = vpop.permute.xlu0 %639
    %641 = vrot.lane.b32.xlu0 %v176, 111
    %v642 = vpop.permute.xlu0 %641
    %643 = vrot.lane.b32.xlu0 %v178, 111
    %v644 = vpop.permute.xlu0 %643
    %645 = vrot.lane.b32.xlu0 %v161, 111
    %v646 = vpop.permute.xlu0 %645
    %647 = vrot.lane.b32.xlu0 %v175, 111
    %v648 = vpop.permute.xlu0 %647
    %649 = vrot.lane.b32.xlu0 %v177, 111
    %v650 = vpop.permute.xlu0 %649
    %651 = vrot.lane.b32.xlu0 %v179, 111
    %v652 = vpop.permute.xlu0 %651
    %v653 = vrot.slane %v638, 1
    %v654 = vrot.slane %v640, 1
    %v655 = vrot.slane %v642, 1
    %v656 = vrot.slane %v644, 1
    %v657 = vrot.slane %v646, 1
    %v658 = vrot.slane %v648, 1
    %v659 = vrot.slane %v650, 1
    %v660 = vrot.slane %v652, 1
    %vm661 = vcmask 908288
    %v662 = vsel %vm661, %v638, %v653
    %v663 = vsel %vm661, %v640, %v654
    %v664 = vsel %vm661, %v642, %v655
    %v665 = vsel %vm661, %v644, %v656
    %v666 = vsel %vm661, %v646, %v657
    %v667 = vsel %vm661, %v648, %v658
    %v668 = vsel %vm661, %v650, %v659
    %v669 = vsel %vm661, %v652, %v660
    %v678 = vmul.f32 %v622, %v662
    %v679 = vmul.f32 %v624, %v663
    %v680 = vmul.f32 %v626, %v664
    %v681 = vmul.f32 %v628, %v665
    %v682 = vmul.f32 %v630, %v666
    %v683 = vmul.f32 %v632, %v667
    %v684 = vmul.f32 %v634, %v668
    %v685 = vmul.f32 %v636, %v669
    %v686 = vadd.f32 %v613, %v678
    %v687 = vadd.f32 %v614, %v679
    %v688 = vadd.f32 %v615, %v680
    %v689 = vadd.f32 %v616, %v681
    %v690 = vadd.f32 %v617, %v682
    %v691 = vadd.f32 %v618, %v683
    %v692 = vadd.f32 %v619, %v684
    %v693 = vadd.f32 %v620, %v685
    %s694 = scalar_lea.vmem %s2, 19
    %v695 = vld [vmem:[%s694] ss:$8 sm:$0x3]
    %s696 = scalar_lea.vmem %s2, 83
    %v697 = vld [vmem:[%s696] ss:$8 sm:$0x3]
    %s698 = scalar_lea.vmem %s2, 147
    %v699 = vld [vmem:[%s698] ss:$8 sm:$0x3]
    %s700 = scalar_lea.vmem %s2, 211
    %v701 = vld [vmem:[%s700] ss:$8 sm:$0x3]
    %s702 = scalar_lea.vmem %s2, 275
    %v703 = vld [vmem:[%s702] ss:$8 sm:$0x3]
    %s704 = scalar_lea.vmem %s2, 339
    %v705 = vld [vmem:[%s704] ss:$8 sm:$0x3]
    %s706 = scalar_lea.vmem %s2, 403
    %v707 = vld [vmem:[%s706] ss:$8 sm:$0x3]
    %s708 = scalar_lea.vmem %s2, 467
    %v709 = vld [vmem:[%s708] ss:$8 sm:$0x3]
    %710 = vrot.lane.b32.xlu0 %v154, 95
    %v711 = vpop.permute.xlu0 %710
    %712 = vrot.lane.b32.xlu0 %v168, 95
    %v713 = vpop.permute.xlu0 %712
    %714 = vrot.lane.b32.xlu0 %v176, 95
    %v715 = vpop.permute.xlu0 %714
    %716 = vrot.lane.b32.xlu0 %v178, 95
    %v717 = vpop.permute.xlu0 %716
    %718 = vrot.lane.b32.xlu0 %v161, 95
    %v719 = vpop.permute.xlu0 %718
    %720 = vrot.lane.b32.xlu0 %v175, 95
    %v721 = vpop.permute.xlu0 %720
    %722 = vrot.lane.b32.xlu0 %v177, 95
    %v723 = vpop.permute.xlu0 %722
    %724 = vrot.lane.b32.xlu0 %v179, 95
    %v725 = vpop.permute.xlu0 %724
    %v726 = vrot.slane %v711, 1
    %v727 = vrot.slane %v713, 1
    %v728 = vrot.slane %v715, 1
    %v729 = vrot.slane %v717, 1
    %v730 = vrot.slane %v719, 1
    %v731 = vrot.slane %v721, 1
    %v732 = vrot.slane %v723, 1
    %v733 = vrot.slane %v725, 1
    %vm734 = vcmask 777216
    %v735 = vsel %vm734, %v711, %v726
    %v736 = vsel %vm734, %v713, %v727
    %v737 = vsel %vm734, %v715, %v728
    %v738 = vsel %vm734, %v717, %v729
    %v739 = vsel %vm734, %v719, %v730
    %v740 = vsel %vm734, %v721, %v731
    %v741 = vsel %vm734, %v723, %v732
    %v742 = vsel %vm734, %v725, %v733
    %v751 = vmul.f32 %v695, %v735
    %v752 = vmul.f32 %v697, %v736
    %v753 = vmul.f32 %v699, %v737
    %v754 = vmul.f32 %v701, %v738
    %v755 = vmul.f32 %v703, %v739
    %v756 = vmul.f32 %v705, %v740
    %v757 = vmul.f32 %v707, %v741
    %v758 = vmul.f32 %v709, %v742
    %v759 = vadd.f32 %v686, %v751
    %v760 = vadd.f32 %v687, %v752
    %v761 = vadd.f32 %v688, %v753
    %v762 = vadd.f32 %v689, %v754
    %v763 = vadd.f32 %v690, %v755
    %v764 = vadd.f32 %v691, %v756
    %v765 = vadd.f32 %v692, %v757
    %v766 = vadd.f32 %v693, %v758
    %s767 = scalar_lea.vmem %s2, 32
    %v768 = vld [vmem:[%s767] ss:$8 sm:$0x3]
    %s769 = scalar_lea.vmem %s2, 96
    %v770 = vld [vmem:[%s769] ss:$8 sm:$0x3]
    %s771 = scalar_lea.vmem %s2, 160
    %v772 = vld [vmem:[%s771] ss:$8 sm:$0x3]
    %s773 = scalar_lea.vmem %s2, 224
    %v774 = vld [vmem:[%s773] ss:$8 sm:$0x3]
    %s775 = scalar_lea.vmem %s2, 288
    %v776 = vld [vmem:[%s775] ss:$8 sm:$0x3]
    %s777 = scalar_lea.vmem %s2, 352
    %v778 = vld [vmem:[%s777] ss:$8 sm:$0x3]
    %s779 = scalar_lea.vmem %s2, 416
    %v780 = vld [vmem:[%s779] ss:$8 sm:$0x3]
    %s781 = scalar_lea.vmem %s2, 480
    %v782 = vld [vmem:[%s781] ss:$8 sm:$0x3]
    %783 = vrot.lane.b32.xlu0 %v154, 79
    %v784 = vpop.permute.xlu0 %783
    %785 = vrot.lane.b32.xlu0 %v168, 79
    %v786 = vpop.permute.xlu0 %785
    %787 = vrot.lane.b32.xlu0 %v176, 79
    %v788 = vpop.permute.xlu0 %787
    %789 = vrot.lane.b32.xlu0 %v178, 79
    %v790 = vpop.permute.xlu0 %789
    %791 = vrot.lane.b32.xlu0 %v161, 79
    %v792 = vpop.permute.xlu0 %791
    %793 = vrot.lane.b32.xlu0 %v175, 79
    %v794 = vpop.permute.xlu0 %793
    %795 = vrot.lane.b32.xlu0 %v177, 79
    %v796 = vpop.permute.xlu0 %795
    %797 = vrot.lane.b32.xlu0 %v179, 79
    %v798 = vpop.permute.xlu0 %797
    %v799 = vrot.slane %v784, 1
    %v800 = vrot.slane %v786, 1
    %v801 = vrot.slane %v788, 1
    %v802 = vrot.slane %v790, 1
    %v803 = vrot.slane %v792, 1
    %v804 = vrot.slane %v794, 1
    %v805 = vrot.slane %v796, 1
    %v806 = vrot.slane %v798, 1
    %vm807 = vcmask 646144
    %v808 = vsel %vm807, %v784, %v799
    %v809 = vsel %vm807, %v786, %v800
    %v810 = vsel %vm807, %v788, %v801
    %v811 = vsel %vm807, %v790, %v802
    %v812 = vsel %vm807, %v792, %v803
    %v813 = vsel %vm807, %v794, %v804
    %v814 = vsel %vm807, %v796, %v805
    %v815 = vsel %vm807, %v798, %v806
    %v824 = vmul.f32 %v768, %v808
    %v825 = vmul.f32 %v770, %v809
    %v826 = vmul.f32 %v772, %v810
    %v827 = vmul.f32 %v774, %v811
    %v828 = vmul.f32 %v776, %v812
    %v829 = vmul.f32 %v778, %v813
    %v830 = vmul.f32 %v780, %v814
    %v831 = vmul.f32 %v782, %v815
    %v832 = vadd.f32 %v759, %v824
    %v833 = vadd.f32 %v760, %v825
    %v834 = vadd.f32 %v761, %v826
    %v835 = vadd.f32 %v762, %v827
    %v836 = vadd.f32 %v763, %v828
    %v837 = vadd.f32 %v764, %v829
    %v838 = vadd.f32 %v765, %v830
    %v839 = vadd.f32 %v766, %v831
    %s840 = scalar_lea.vmem %s2, 37
    %v841 = vld [vmem:[%s840] ss:$8 sm:$0x3]
    %s842 = scalar_lea.vmem %s2, 101
    %v843 = vld [vmem:[%s842] ss:$8 sm:$0x3]
    %s844 = scalar_lea.vmem %s2, 165
    %v845 = vld [vmem:[%s844] ss:$8 sm:$0x3]
    %s846 = scalar_lea.vmem %s2, 229
    %v847 = vld [vmem:[%s846] ss:$8 sm:$0x3]
    %s848 = scalar_lea.vmem %s2, 293
    %v849 = vld [vmem:[%s848] ss:$8 sm:$0x3]
    %s850 = scalar_lea.vmem %s2, 357
    %v851 = vld [vmem:[%s850] ss:$8 sm:$0x3]
    %s852 = scalar_lea.vmem %s2, 421
    %v853 = vld [vmem:[%s852] ss:$8 sm:$0x3]
    %s854 = scalar_lea.vmem %s2, 485
    %v855 = vld [vmem:[%s854] ss:$8 sm:$0x3]
    %856 = vrot.lane.b32.xlu0 %v154, 63
    %v857 = vpop.permute.xlu0 %856
    %858 = vrot.lane.b32.xlu0 %v168, 63
    %v859 = vpop.permute.xlu0 %858
    %860 = vrot.lane.b32.xlu0 %v176, 63
    %v861 = vpop.permute.xlu0 %860
    %862 = vrot.lane.b32.xlu0 %v178, 63
    %v863 = vpop.permute.xlu0 %862
    %864 = vrot.lane.b32.xlu0 %v161, 63
    %v865 = vpop.permute.xlu0 %864
    %866 = vrot.lane.b32.xlu0 %v175, 63
    %v867 = vpop.permute.xlu0 %866
    %868 = vrot.lane.b32.xlu0 %v177, 63
    %v869 = vpop.permute.xlu0 %868
    %870 = vrot.lane.b32.xlu0 %v179, 63
    %v871 = vpop.permute.xlu0 %870
    %v872 = vrot.slane %v857, 1
    %v873 = vrot.slane %v859, 1
    %v874 = vrot.slane %v861, 1
    %v875 = vrot.slane %v863, 1
    %v876 = vrot.slane %v865, 1
    %v877 = vrot.slane %v867, 1
    %v878 = vrot.slane %v869, 1
    %v879 = vrot.slane %v871, 1
    %vm880 = vcmask 515072
    %v881 = vsel %vm880, %v857, %v872
    %v882 = vsel %vm880, %v859, %v873
    %v883 = vsel %vm880, %v861, %v874
    %v884 = vsel %vm880, %v863, %v875
    %v885 = vsel %vm880, %v865, %v876
    %v886 = vsel %vm880, %v867, %v877
    %v887 = vsel %vm880, %v869, %v878
    %v888 = vsel %vm880, %v871, %v879
    %v897 = vmul.f32 %v841, %v881
    %v898 = vmul.f32 %v843, %v882
    %v899 = vmul.f32 %v845, %v883
    %v900 = vmul.f32 %v847, %v884
    %v901 = vmul.f32 %v849, %v885
    %v902 = vmul.f32 %v851, %v886
    %v903 = vmul.f32 %v853, %v887
    %v904 = vmul.f32 %v855, %v888
    %v905 = vadd.f32 %v832, %v897
    %v906 = vadd.f32 %v833, %v898
    %v907 = vadd.f32 %v834, %v899
    %v908 = vadd.f32 %v835, %v900
    %v909 = vadd.f32 %v836, %v901
    %v910 = vadd.f32 %v837, %v902
    %v911 = vadd.f32 %v838, %v903
    %v912 = vadd.f32 %v839, %v904
    %s913 = scalar_lea.vmem %s0, 1
    %v914 = vld [vmem:[%s913] ss:$8 sm:$0x3]
    %v916 = vlaneseq
    %v917 = vshrl.u32 %v916, 7
    %v918 = vsub.s32 0, %v917
    %v919 = vrot.slane %v914, %v918
    %v920 = vlaneseq
    %v921 = vshrl.u32 %v920, 7
    %v922 = vsub.s32 1, %v921
    %v923 = vrot.slane %v914, %v922
    %v934 = vcombine.low %v905, %v906
    %v935 = vcombine.low %v907, %v908
    %v936 = vcombine.low %v909, %v910
    %v937 = vcombine.low %v911, %v912
    %v939 = vunpack.c.l.s4 1966171168
    %v940 = vunpack.c.0.s8 %v939
    %v941 = vlaneseq
    %v942 = vshrl.u32 %v941, 7
    %v943 = vsub.s32 %v940, %v942
    %v944 = vrot.slane %v934, %v943
    %v946 = vunpack.c.l.s4 1966171168
    %v947 = vunpack.c.0.s8 %v946
    %v948 = vlaneseq
    %v949 = vshrl.u32 %v948, 7
    %v950 = vsub.s32 %v947, %v949
    %v951 = vrot.slane %v935, %v950
    %v953 = vunpack.c.l.s4 1966171168
    %v954 = vunpack.c.0.s8 %v953
    %v955 = vlaneseq
    %v956 = vshrl.u32 %v955, 7
    %v957 = vsub.s32 %v954, %v956
    %v958 = vrot.slane %v936, %v957
    %v960 = vunpack.c.l.s4 1966171168
    %v961 = vunpack.c.0.s8 %v960
    %v962 = vlaneseq
    %v963 = vshrl.u32 %v962, 7
    %v964 = vsub.s32 %v961, %v963
    %v965 = vrot.slane %v937, %v964
    %v966 = vcombine.low %v944, %v951
    %v967 = vcombine.high %v944, %v951
    %v968 = vcombine.low %v958, %v965
    %v969 = vcombine.high %v958, %v965
    %v971 = vunpack.c.l.s4 1966171168
    %v972 = vunpack.c.0.s8 %v971
    %v973 = vlaneseq
    %v974 = vshrl.u32 %v973, 7
    %v975 = vsub.s32 %v972, %v974
    %v976 = vrot.slane %v966, %v975
    %v978 = vunpack.c.l.s4 1966171168
    %v979 = vunpack.c.0.s8 %v978
    %v980 = vlaneseq
    %v981 = vshrl.u32 %v980, 7
    %v982 = vsub.s32 %v979, %v981
    %v983 = vrot.slane %v967, %v982
    %v985 = vunpack.c.l.s4 1966171168
    %v986 = vunpack.c.0.s8 %v985
    %v987 = vlaneseq
    %v988 = vshrl.u32 %v987, 7
    %v989 = vsub.s32 %v986, %v988
    %v990 = vrot.slane %v968, %v989
    %v992 = vunpack.c.l.s4 1966171168
    %v993 = vunpack.c.0.s8 %v992
    %v994 = vlaneseq
    %v995 = vshrl.u32 %v994, 7
    %v996 = vsub.s32 %v993, %v995
    %v997 = vrot.slane %v969, %v996
    %v998 = vcombine.low %v976, %v990
    %v999 = vcombine.low %v983, %v997
    %v1002 = vmul.f32 %v919, %v998
    %v1003 = vmul.f32 %v923, %v999
    %v1004 = vadd.f32 %v546, %v1002
    %v1005 = vadd.f32 %v547, %v1003
    %s1006 = scalar_lea.vmem %s2, 2
    %v1007 = vld [vmem:[%s1006] ss:$8 sm:$0x3]
    %s1008 = scalar_lea.vmem %s2, 66
    %v1009 = vld [vmem:[%s1008] ss:$8 sm:$0x3]
    %s1010 = scalar_lea.vmem %s2, 130
    %v1011 = vld [vmem:[%s1010] ss:$8 sm:$0x3]
    %s1012 = scalar_lea.vmem %s2, 194
    %v1013 = vld [vmem:[%s1012] ss:$8 sm:$0x3]
    %s1014 = scalar_lea.vmem %s2, 258
    %v1015 = vld [vmem:[%s1014] ss:$8 sm:$0x3]
    %s1016 = scalar_lea.vmem %s2, 322
    %v1017 = vld [vmem:[%s1016] ss:$8 sm:$0x3]
    %s1018 = scalar_lea.vmem %s2, 386
    %v1019 = vld [vmem:[%s1018] ss:$8 sm:$0x3]
    %s1020 = scalar_lea.vmem %s2, 450
    %v1021 = vld [vmem:[%s1020] ss:$8 sm:$0x3]
    %1022 = vrot.lane.b32.xlu0 %v154, 126
    %v1023 = vpop.permute.xlu0 %1022
    %1024 = vrot.lane.b32.xlu0 %v168, 126
    %v1025 = vpop.permute.xlu0 %1024
    %1026 = vrot.lane.b32.xlu0 %v176, 126
    %v1027 = vpop.permute.xlu0 %1026
    %1028 = vrot.lane.b32.xlu0 %v178, 126
    %v1029 = vpop.permute.xlu0 %1028
    %1030 = vrot.lane.b32.xlu0 %v161, 126
    %v1031 = vpop.permute.xlu0 %1030
    %1032 = vrot.lane.b32.xlu0 %v175, 126
    %v1033 = vpop.permute.xlu0 %1032
    %1034 = vrot.lane.b32.xlu0 %v177, 126
    %v1035 = vpop.permute.xlu0 %1034
    %1036 = vrot.lane.b32.xlu0 %v179, 126
    %v1037 = vpop.permute.xlu0 %1036
    %v1038 = vrot.slane %v1023, 1
    %v1039 = vrot.slane %v1025, 1
    %v1040 = vrot.slane %v1027, 1
    %v1041 = vrot.slane %v1029, 1
    %v1042 = vrot.slane %v1031, 1
    %v1043 = vrot.slane %v1033, 1
    %v1044 = vrot.slane %v1035, 1
    %v1045 = vrot.slane %v1037, 1
    %vm1046 = vcmask 1031168
    %v1047 = vsel %vm1046, %v1023, %v1038
    %v1048 = vsel %vm1046, %v1025, %v1039
    %v1049 = vsel %vm1046, %v1027, %v1040
    %v1050 = vsel %vm1046, %v1029, %v1041
    %v1051 = vsel %vm1046, %v1031, %v1042
    %v1052 = vsel %vm1046, %v1033, %v1043
    %v1053 = vsel %vm1046, %v1035, %v1044
    %v1054 = vsel %vm1046, %v1037, %v1045
    %v1063 = vmul.f32 %v1007, %v1047
    %v1064 = vmul.f32 %v1009, %v1048
    %v1065 = vmul.f32 %v1011, %v1049
    %v1066 = vmul.f32 %v1013, %v1050
    %v1067 = vmul.f32 %v1015, %v1051
    %v1068 = vmul.f32 %v1017, %v1052
    %v1069 = vmul.f32 %v1019, %v1053
    %v1070 = vmul.f32 %v1021, %v1054
    %v1071 = vadd.f32 %v1063, 0.0
    %v1072 = vadd.f32 %v1064, 0.0
    %v1073 = vadd.f32 %v1065, 0.0
    %v1074 = vadd.f32 %v1066, 0.0
    %v1075 = vadd.f32 %v1067, 0.0
    %v1076 = vadd.f32 %v1068, 0.0
    %v1077 = vadd.f32 %v1069, 0.0
    %v1078 = vadd.f32 %v1070, 0.0
    %s1079 = scalar_lea.vmem %s2, 7
    %v1080 = vld [vmem:[%s1079] ss:$8 sm:$0x3]
    %s1081 = scalar_lea.vmem %s2, 71
    %v1082 = vld [vmem:[%s1081] ss:$8 sm:$0x3]
    %s1083 = scalar_lea.vmem %s2, 135
    %v1084 = vld [vmem:[%s1083] ss:$8 sm:$0x3]
    %s1085 = scalar_lea.vmem %s2, 199
    %v1086 = vld [vmem:[%s1085] ss:$8 sm:$0x3]
    %s1087 = scalar_lea.vmem %s2, 263
    %v1088 = vld [vmem:[%s1087] ss:$8 sm:$0x3]
    %s1089 = scalar_lea.vmem %s2, 327
    %v1090 = vld [vmem:[%s1089] ss:$8 sm:$0x3]
    %s1091 = scalar_lea.vmem %s2, 391
    %v1092 = vld [vmem:[%s1091] ss:$8 sm:$0x3]
    %s1093 = scalar_lea.vmem %s2, 455
    %v1094 = vld [vmem:[%s1093] ss:$8 sm:$0x3]
    %1095 = vrot.lane.b32.xlu0 %v154, 110
    %v1096 = vpop.permute.xlu0 %1095
    %1097 = vrot.lane.b32.xlu0 %v168, 110
    %v1098 = vpop.permute.xlu0 %1097
    %1099 = vrot.lane.b32.xlu0 %v176, 110
    %v1100 = vpop.permute.xlu0 %1099
    %1101 = vrot.lane.b32.xlu0 %v178, 110
    %v1102 = vpop.permute.xlu0 %1101
    %1103 = vrot.lane.b32.xlu0 %v161, 110
    %v1104 = vpop.permute.xlu0 %1103
    %1105 = vrot.lane.b32.xlu0 %v175, 110
    %v1106 = vpop.permute.xlu0 %1105
    %1107 = vrot.lane.b32.xlu0 %v177, 110
    %v1108 = vpop.permute.xlu0 %1107
    %1109 = vrot.lane.b32.xlu0 %v179, 110
    %v1110 = vpop.permute.xlu0 %1109
    %v1111 = vrot.slane %v1096, 1
    %v1112 = vrot.slane %v1098, 1
    %v1113 = vrot.slane %v1100, 1
    %v1114 = vrot.slane %v1102, 1
    %v1115 = vrot.slane %v1104, 1
    %v1116 = vrot.slane %v1106, 1
    %v1117 = vrot.slane %v1108, 1
    %v1118 = vrot.slane %v1110, 1
    %vm1119 = vcmask 900096
    %v1120 = vsel %vm1119, %v1096, %v1111
    %v1121 = vsel %vm1119, %v1098, %v1112
    %v1122 = vsel %vm1119, %v1100, %v1113
    %v1123 = vsel %vm1119, %v1102, %v1114
    %v1124 = vsel %vm1119, %v1104, %v1115
    %v1125 = vsel %vm1119, %v1106, %v1116
    %v1126 = vsel %vm1119, %v1108, %v1117
    %v1127 = vsel %vm1119, %v1110, %v1118
    %v1136 = vmul.f32 %v1080, %v1120
    %v1137 = vmul.f32 %v1082, %v1121
    %v1138 = vmul.f32 %v1084, %v1122
    %v1139 = vmul.f32 %v1086, %v1123
    %v1140 = vmul.f32 %v1088, %v1124
    %v1141 = vmul.f32 %v1090, %v1125
    %v1142 = vmul.f32 %v1092, %v1126
    %v1143 = vmul.f32 %v1094, %v1127
    %v1144 = vadd.f32 %v1071, %v1136
    %v1145 = vadd.f32 %v1072, %v1137
    %v1146 = vadd.f32 %v1073, %v1138
    %v1147 = vadd.f32 %v1074, %v1139
    %v1148 = vadd.f32 %v1075, %v1140
    %v1149 = vadd.f32 %v1076, %v1141
    %v1150 = vadd.f32 %v1077, %v1142
    %v1151 = vadd.f32 %v1078, %v1143
    %s1152 = scalar_lea.vmem %s2, 20
    %v1153 = vld [vmem:[%s1152] ss:$8 sm:$0x3]
    %s1154 = scalar_lea.vmem %s2, 84
    %v1155 = vld [vmem:[%s1154] ss:$8 sm:$0x3]
    %s1156 = scalar_lea.vmem %s2, 148
    %v1157 = vld [vmem:[%s1156] ss:$8 sm:$0x3]
    %s1158 = scalar_lea.vmem %s2, 212
    %v1159 = vld [vmem:[%s1158] ss:$8 sm:$0x3]
    %s1160 = scalar_lea.vmem %s2, 276
    %v1161 = vld [vmem:[%s1160] ss:$8 sm:$0x3]
    %s1162 = scalar_lea.vmem %s2, 340
    %v1163 = vld [vmem:[%s1162] ss:$8 sm:$0x3]
    %s1164 = scalar_lea.vmem %s2, 404
    %v1165 = vld [vmem:[%s1164] ss:$8 sm:$0x3]
    %s1166 = scalar_lea.vmem %s2, 468
    %v1167 = vld [vmem:[%s1166] ss:$8 sm:$0x3]
    %1168 = vrot.lane.b32.xlu0 %v154, 94
    %v1169 = vpop.permute.xlu0 %1168
    %1170 = vrot.lane.b32.xlu0 %v168, 94
    %v1171 = vpop.permute.xlu0 %1170
    %1172 = vrot.lane.b32.xlu0 %v176, 94
    %v1173 = vpop.permute.xlu0 %1172
    %1174 = vrot.lane.b32.xlu0 %v178, 94
    %v1175 = vpop.permute.xlu0 %1174
    %1176 = vrot.lane.b32.xlu0 %v161, 94
    %v1177 = vpop.permute.xlu0 %1176
    %1178 = vrot.lane.b32.xlu0 %v175, 94
    %v1179 = vpop.permute.xlu0 %1178
    %1180 = vrot.lane.b32.xlu0 %v177, 94
    %v1181 = vpop.permute.xlu0 %1180
    %1182 = vrot.lane.b32.xlu0 %v179, 94
    %v1183 = vpop.permute.xlu0 %1182
    %v1184 = vrot.slane %v1169, 1
    %v1185 = vrot.slane %v1171, 1
    %v1186 = vrot.slane %v1173, 1
    %v1187 = vrot.slane %v1175, 1
    %v1188 = vrot.slane %v1177, 1
    %v1189 = vrot.slane %v1179, 1
    %v1190 = vrot.slane %v1181, 1
    %v1191 = vrot.slane %v1183, 1
    %vm1192 = vcmask 769024
    %v1193 = vsel %vm1192, %v1169, %v1184
    %v1194 = vsel %vm1192, %v1171, %v1185
    %v1195 = vsel %vm1192, %v1173, %v1186
    %v1196 = vsel %vm1192, %v1175, %v1187
    %v1197 = vsel %vm1192, %v1177, %v1188
    %v1198 = vsel %vm1192, %v1179, %v1189
    %v1199 = vsel %vm1192, %v1181, %v1190
    %v1200 = vsel %vm1192, %v1183, %v1191
    %v1209 = vmul.f32 %v1153, %v1193
    %v1210 = vmul.f32 %v1155, %v1194
    %v1211 = vmul.f32 %v1157, %v1195
    %v1212 = vmul.f32 %v1159, %v1196
    %v1213 = vmul.f32 %v1161, %v1197
    %v1214 = vmul.f32 %v1163, %v1198
    %v1215 = vmul.f32 %v1165, %v1199
    %v1216 = vmul.f32 %v1167, %v1200
    %v1217 = vadd.f32 %v1144, %v1209
    %v1218 = vadd.f32 %v1145, %v1210
    %v1219 = vadd.f32 %v1146, %v1211
    %v1220 = vadd.f32 %v1147, %v1212
    %v1221 = vadd.f32 %v1148, %v1213
    %v1222 = vadd.f32 %v1149, %v1214
    %v1223 = vadd.f32 %v1150, %v1215
    %v1224 = vadd.f32 %v1151, %v1216
    %s1225 = scalar_lea.vmem %s2, 33
    %v1226 = vld [vmem:[%s1225] ss:$8 sm:$0x3]
    %s1227 = scalar_lea.vmem %s2, 97
    %v1228 = vld [vmem:[%s1227] ss:$8 sm:$0x3]
    %s1229 = scalar_lea.vmem %s2, 161
    %v1230 = vld [vmem:[%s1229] ss:$8 sm:$0x3]
    %s1231 = scalar_lea.vmem %s2, 225
    %v1232 = vld [vmem:[%s1231] ss:$8 sm:$0x3]
    %s1233 = scalar_lea.vmem %s2, 289
    %v1234 = vld [vmem:[%s1233] ss:$8 sm:$0x3]
    %s1235 = scalar_lea.vmem %s2, 353
    %v1236 = vld [vmem:[%s1235] ss:$8 sm:$0x3]
    %s1237 = scalar_lea.vmem %s2, 417
    %v1238 = vld [vmem:[%s1237] ss:$8 sm:$0x3]
    %s1239 = scalar_lea.vmem %s2, 481
    %v1240 = vld [vmem:[%s1239] ss:$8 sm:$0x3]
    %1241 = vrot.lane.b32.xlu0 %v154, 78
    %v1242 = vpop.permute.xlu0 %1241
    %1243 = vrot.lane.b32.xlu0 %v168, 78
    %v1244 = vpop.permute.xlu0 %1243
    %1245 = vrot.lane.b32.xlu0 %v176, 78
    %v1246 = vpop.permute.xlu0 %1245
    %1247 = vrot.lane.b32.xlu0 %v178, 78
    %v1248 = vpop.permute.xlu0 %1247
    %1249 = vrot.lane.b32.xlu0 %v161, 78
    %v1250 = vpop.permute.xlu0 %1249
    %1251 = vrot.lane.b32.xlu0 %v175, 78
    %v1252 = vpop.permute.xlu0 %1251
    %1253 = vrot.lane.b32.xlu0 %v177, 78
    %v1254 = vpop.permute.xlu0 %1253
    %1255 = vrot.lane.b32.xlu0 %v179, 78
    %v1256 = vpop.permute.xlu0 %1255
    %v1257 = vrot.slane %v1242, 1
    %v1258 = vrot.slane %v1244, 1
    %v1259 = vrot.slane %v1246, 1
    %v1260 = vrot.slane %v1248, 1
    %v1261 = vrot.slane %v1250, 1
    %v1262 = vrot.slane %v1252, 1
    %v1263 = vrot.slane %v1254, 1
    %v1264 = vrot.slane %v1256, 1
    %vm1265 = vcmask 637952
    %v1266 = vsel %vm1265, %v1242, %v1257
    %v1267 = vsel %vm1265, %v1244, %v1258
    %v1268 = vsel %vm1265, %v1246, %v1259
    %v1269 = vsel %vm1265, %v1248, %v1260
    %v1270 = vsel %vm1265, %v1250, %v1261
    %v1271 = vsel %vm1265, %v1252, %v1262
    %v1272 = vsel %vm1265, %v1254, %v1263
    %v1273 = vsel %vm1265, %v1256, %v1264
    %v1282 = vmul.f32 %v1226, %v1266
    %v1283 = vmul.f32 %v1228, %v1267
    %v1284 = vmul.f32 %v1230, %v1268
    %v1285 = vmul.f32 %v1232, %v1269
    %v1286 = vmul.f32 %v1234, %v1270
    %v1287 = vmul.f32 %v1236, %v1271
    %v1288 = vmul.f32 %v1238, %v1272
    %v1289 = vmul.f32 %v1240, %v1273
    %v1290 = vadd.f32 %v1217, %v1282
    %v1291 = vadd.f32 %v1218, %v1283
    %v1292 = vadd.f32 %v1219, %v1284
    %v1293 = vadd.f32 %v1220, %v1285
    %v1294 = vadd.f32 %v1221, %v1286
    %v1295 = vadd.f32 %v1222, %v1287
    %v1296 = vadd.f32 %v1223, %v1288
    %v1297 = vadd.f32 %v1224, %v1289
    %s1298 = scalar_lea.vmem %s2, 38
    %v1299 = vld [vmem:[%s1298] ss:$8 sm:$0x3]
    %s1300 = scalar_lea.vmem %s2, 102
    %v1301 = vld [vmem:[%s1300] ss:$8 sm:$0x3]
    %s1302 = scalar_lea.vmem %s2, 166
    %v1303 = vld [vmem:[%s1302] ss:$8 sm:$0x3]
    %s1304 = scalar_lea.vmem %s2, 230
    %v1305 = vld [vmem:[%s1304] ss:$8 sm:$0x3]
    %s1306 = scalar_lea.vmem %s2, 294
    %v1307 = vld [vmem:[%s1306] ss:$8 sm:$0x3]
    %s1308 = scalar_lea.vmem %s2, 358
    %v1309 = vld [vmem:[%s1308] ss:$8 sm:$0x3]
    %s1310 = scalar_lea.vmem %s2, 422
    %v1311 = vld [vmem:[%s1310] ss:$8 sm:$0x3]
    %s1312 = scalar_lea.vmem %s2, 486
    %v1313 = vld [vmem:[%s1312] ss:$8 sm:$0x3]
    %1314 = vrot.lane.b32.xlu0 %v154, 62
    %v1315 = vpop.permute.xlu0 %1314
    %1316 = vrot.lane.b32.xlu0 %v168, 62
    %v1317 = vpop.permute.xlu0 %1316
    %1318 = vrot.lane.b32.xlu0 %v176, 62
    %v1319 = vpop.permute.xlu0 %1318
    %1320 = vrot.lane.b32.xlu0 %v178, 62
    %v1321 = vpop.permute.xlu0 %1320
    %1322 = vrot.lane.b32.xlu0 %v161, 62
    %v1323 = vpop.permute.xlu0 %1322
    %1324 = vrot.lane.b32.xlu0 %v175, 62
    %v1325 = vpop.permute.xlu0 %1324
    %1326 = vrot.lane.b32.xlu0 %v177, 62
    %v1327 = vpop.permute.xlu0 %1326
    %1328 = vrot.lane.b32.xlu0 %v179, 62
    %v1329 = vpop.permute.xlu0 %1328
    %v1330 = vrot.slane %v1315, 1
    %v1331 = vrot.slane %v1317, 1
    %v1332 = vrot.slane %v1319, 1
    %v1333 = vrot.slane %v1321, 1
    %v1334 = vrot.slane %v1323, 1
    %v1335 = vrot.slane %v1325, 1
    %v1336 = vrot.slane %v1327, 1
    %v1337 = vrot.slane %v1329, 1
    %vm1338 = vcmask 506880
    %v1339 = vsel %vm1338, %v1315, %v1330
    %v1340 = vsel %vm1338, %v1317, %v1331
    %v1341 = vsel %vm1338, %v1319, %v1332
    %v1342 = vsel %vm1338, %v1321, %v1333
    %v1343 = vsel %vm1338, %v1323, %v1334
    %v1344 = vsel %vm1338, %v1325, %v1335
    %v1345 = vsel %vm1338, %v1327, %v1336
    %v1346 = vsel %vm1338, %v1329, %v1337
    %v1355 = vmul.f32 %v1299, %v1339
    %v1356 = vmul.f32 %v1301, %v1340
    %v1357 = vmul.f32 %v1303, %v1341
    %v1358 = vmul.f32 %v1305, %v1342
    %v1359 = vmul.f32 %v1307, %v1343
    %v1360 = vmul.f32 %v1309, %v1344
    %v1361 = vmul.f32 %v1311, %v1345
    %v1362 = vmul.f32 %v1313, %v1346
    %v1363 = vadd.f32 %v1290, %v1355
    %v1364 = vadd.f32 %v1291, %v1356
    %v1365 = vadd.f32 %v1292, %v1357
    %v1366 = vadd.f32 %v1293, %v1358
    %v1367 = vadd.f32 %v1294, %v1359
    %v1368 = vadd.f32 %v1295, %v1360
    %v1369 = vadd.f32 %v1296, %v1361
    %v1370 = vadd.f32 %v1297, %v1362
    %s1371 = scalar_lea.vmem %s0, 2
    %v1372 = vld [vmem:[%s1371] ss:$8 sm:$0x3]
    %v1374 = vlaneseq
    %v1375 = vshrl.u32 %v1374, 7
    %v1376 = vsub.s32 0, %v1375
    %v1377 = vrot.slane %v1372, %v1376
    %v1378 = vlaneseq
    %v1379 = vshrl.u32 %v1378, 7
    %v1380 = vsub.s32 1, %v1379
    %v1381 = vrot.slane %v1372, %v1380
    %v1392 = vcombine.low %v1363, %v1364
    %v1393 = vcombine.low %v1365, %v1366
    %v1394 = vcombine.low %v1367, %v1368
    %v1395 = vcombine.low %v1369, %v1370
    %v1397 = vunpack.c.l.s4 1966171168
    %v1398 = vunpack.c.0.s8 %v1397
    %v1399 = vlaneseq
    %v1400 = vshrl.u32 %v1399, 7
    %v1401 = vsub.s32 %v1398, %v1400
    %v1402 = vrot.slane %v1392, %v1401
    %v1404 = vunpack.c.l.s4 1966171168
    %v1405 = vunpack.c.0.s8 %v1404
    %v1406 = vlaneseq
    %v1407 = vshrl.u32 %v1406, 7
    %v1408 = vsub.s32 %v1405, %v1407
    %v1409 = vrot.slane %v1393, %v1408
    %v1411 = vunpack.c.l.s4 1966171168
    %v1412 = vunpack.c.0.s8 %v1411
    %v1413 = vlaneseq
    %v1414 = vshrl.u32 %v1413, 7
    %v1415 = vsub.s32 %v1412, %v1414
    %v1416 = vrot.slane %v1394, %v1415
    %v1418 = vunpack.c.l.s4 1966171168
    %v1419 = vunpack.c.0.s8 %v1418
    %v1420 = vlaneseq
    %v1421 = vshrl.u32 %v1420, 7
    %v1422 = vsub.s32 %v1419, %v1421
    %v1423 = vrot.slane %v1395, %v1422
    %v1424 = vcombine.low %v1402, %v1409
    %v1425 = vcombine.high %v1402, %v1409
    %v1426 = vcombine.low %v1416, %v1423
    %v1427 = vcombine.high %v1416, %v1423
    %v1429 = vunpack.c.l.s4 1966171168
    %v1430 = vunpack.c.0.s8 %v1429
    %v1431 = vlaneseq
    %v1432 = vshrl.u32 %v1431, 7
    %v1433 = vsub.s32 %v1430, %v1432
    %v1434 = vrot.slane %v1424, %v1433
    %v1436 = vunpack.c.l.s4 1966171168
    %v1437 = vunpack.c.0.s8 %v1436
    %v1438 = vlaneseq
    %v1439 = vshrl.u32 %v1438, 7
    %v1440 = vsub.s32 %v1437, %v1439
    %v1441 = vrot.slane %v1425, %v1440
    %v1443 = vunpack.c.l.s4 1966171168
    %v1444 = vunpack.c.0.s8 %v1443
    %v1445 = vlaneseq
    %v1446 = vshrl.u32 %v1445, 7
    %v1447 = vsub.s32 %v1444, %v1446
    %v1448 = vrot.slane %v1426, %v1447
    %v1450 = vunpack.c.l.s4 1966171168
    %v1451 = vunpack.c.0.s8 %v1450
    %v1452 = vlaneseq
    %v1453 = vshrl.u32 %v1452, 7
    %v1454 = vsub.s32 %v1451, %v1453
    %v1455 = vrot.slane %v1427, %v1454
    %v1456 = vcombine.low %v1434, %v1448
    %v1457 = vcombine.low %v1441, %v1455
    %v1460 = vmul.f32 %v1377, %v1456
    %v1461 = vmul.f32 %v1381, %v1457
    %v1462 = vadd.f32 %v1004, %v1460
    %v1463 = vadd.f32 %v1005, %v1461
    %s1464 = scalar_lea.vmem %s2, 3
    %v1465 = vld [vmem:[%s1464] ss:$8 sm:$0x3]
    %s1466 = scalar_lea.vmem %s2, 67
    %v1467 = vld [vmem:[%s1466] ss:$8 sm:$0x3]
    %s1468 = scalar_lea.vmem %s2, 131
    %v1469 = vld [vmem:[%s1468] ss:$8 sm:$0x3]
    %s1470 = scalar_lea.vmem %s2, 195
    %v1471 = vld [vmem:[%s1470] ss:$8 sm:$0x3]
    %s1472 = scalar_lea.vmem %s2, 259
    %v1473 = vld [vmem:[%s1472] ss:$8 sm:$0x3]
    %s1474 = scalar_lea.vmem %s2, 323
    %v1475 = vld [vmem:[%s1474] ss:$8 sm:$0x3]
    %s1476 = scalar_lea.vmem %s2, 387
    %v1477 = vld [vmem:[%s1476] ss:$8 sm:$0x3]
    %s1478 = scalar_lea.vmem %s2, 451
    %v1479 = vld [vmem:[%s1478] ss:$8 sm:$0x3]
    %1480 = vrot.lane.b32.xlu0 %v154, 125
    %v1481 = vpop.permute.xlu0 %1480
    %1482 = vrot.lane.b32.xlu0 %v168, 125
    %v1483 = vpop.permute.xlu0 %1482
    %1484 = vrot.lane.b32.xlu0 %v176, 125
    %v1485 = vpop.permute.xlu0 %1484
    %1486 = vrot.lane.b32.xlu0 %v178, 125
    %v1487 = vpop.permute.xlu0 %1486
    %1488 = vrot.lane.b32.xlu0 %v161, 125
    %v1489 = vpop.permute.xlu0 %1488
    %1490 = vrot.lane.b32.xlu0 %v175, 125
    %v1491 = vpop.permute.xlu0 %1490
    %1492 = vrot.lane.b32.xlu0 %v177, 125
    %v1493 = vpop.permute.xlu0 %1492
    %1494 = vrot.lane.b32.xlu0 %v179, 125
    %v1495 = vpop.permute.xlu0 %1494
    %v1496 = vrot.slane %v1481, 1
    %v1497 = vrot.slane %v1483, 1
    %v1498 = vrot.slane %v1485, 1
    %v1499 = vrot.slane %v1487, 1
    %v1500 = vrot.slane %v1489, 1
    %v1501 = vrot.slane %v1491, 1
    %v1502 = vrot.slane %v1493, 1
    %v1503 = vrot.slane %v1495, 1
    %vm1504 = vcmask 1022976
    %v1505 = vsel %vm1504, %v1481, %v1496
    %v1506 = vsel %vm1504, %v1483, %v1497
    %v1507 = vsel %vm1504, %v1485, %v1498
    %v1508 = vsel %vm1504, %v1487, %v1499
    %v1509 = vsel %vm1504, %v1489, %v1500
    %v1510 = vsel %vm1504, %v1491, %v1501
    %v1511 = vsel %vm1504, %v1493, %v1502
    %v1512 = vsel %vm1504, %v1495, %v1503
    %v1521 = vmul.f32 %v1465, %v1505
    %v1522 = vmul.f32 %v1467, %v1506
    %v1523 = vmul.f32 %v1469, %v1507
    %v1524 = vmul.f32 %v1471, %v1508
    %v1525 = vmul.f32 %v1473, %v1509
    %v1526 = vmul.f32 %v1475, %v1510
    %v1527 = vmul.f32 %v1477, %v1511
    %v1528 = vmul.f32 %v1479, %v1512
    %v1529 = vadd.f32 %v1521, 0.0
    %v1530 = vadd.f32 %v1522, 0.0
    %v1531 = vadd.f32 %v1523, 0.0
    %v1532 = vadd.f32 %v1524, 0.0
    %v1533 = vadd.f32 %v1525, 0.0
    %v1534 = vadd.f32 %v1526, 0.0
    %v1535 = vadd.f32 %v1527, 0.0
    %v1536 = vadd.f32 %v1528, 0.0
    %s1537 = scalar_lea.vmem %s2, 16
    %v1538 = vld [vmem:[%s1537] ss:$8 sm:$0x3]
    %s1539 = scalar_lea.vmem %s2, 80
    %v1540 = vld [vmem:[%s1539] ss:$8 sm:$0x3]
    %s1541 = scalar_lea.vmem %s2, 144
    %v1542 = vld [vmem:[%s1541] ss:$8 sm:$0x3]
    %s1543 = scalar_lea.vmem %s2, 208
    %v1544 = vld [vmem:[%s1543] ss:$8 sm:$0x3]
    %s1545 = scalar_lea.vmem %s2, 272
    %v1546 = vld [vmem:[%s1545] ss:$8 sm:$0x3]
    %s1547 = scalar_lea.vmem %s2, 336
    %v1548 = vld [vmem:[%s1547] ss:$8 sm:$0x3]
    %s1549 = scalar_lea.vmem %s2, 400
    %v1550 = vld [vmem:[%s1549] ss:$8 sm:$0x3]
    %s1551 = scalar_lea.vmem %s2, 464
    %v1552 = vld [vmem:[%s1551] ss:$8 sm:$0x3]
    %1553 = vrot.lane.b32.xlu0 %v154, 109
    %v1554 = vpop.permute.xlu0 %1553
    %1555 = vrot.lane.b32.xlu0 %v168, 109
    %v1556 = vpop.permute.xlu0 %1555
    %1557 = vrot.lane.b32.xlu0 %v176, 109
    %v1558 = vpop.permute.xlu0 %1557
    %1559 = vrot.lane.b32.xlu0 %v178, 109
    %v1560 = vpop.permute.xlu0 %1559
    %1561 = vrot.lane.b32.xlu0 %v161, 109
    %v1562 = vpop.permute.xlu0 %1561
    %1563 = vrot.lane.b32.xlu0 %v175, 109
    %v1564 = vpop.permute.xlu0 %1563
    %1565 = vrot.lane.b32.xlu0 %v177, 109
    %v1566 = vpop.permute.xlu0 %1565
    %1567 = vrot.lane.b32.xlu0 %v179, 109
    %v1568 = vpop.permute.xlu0 %1567
    %v1569 = vrot.slane %v1554, 1
    %v1570 = vrot.slane %v1556, 1
    %v1571 = vrot.slane %v1558, 1
    %v1572 = vrot.slane %v1560, 1
    %v1573 = vrot.slane %v1562, 1
    %v1574 = vrot.slane %v1564, 1
    %v1575 = vrot.slane %v1566, 1
    %v1576 = vrot.slane %v1568, 1
    %vm1577 = vcmask 891904
    %v1578 = vsel %vm1577, %v1554, %v1569
    %v1579 = vsel %vm1577, %v1556, %v1570
    %v1580 = vsel %vm1577, %v1558, %v1571
    %v1581 = vsel %vm1577, %v1560, %v1572
    %v1582 = vsel %vm1577, %v1562, %v1573
    %v1583 = vsel %vm1577, %v1564, %v1574
    %v1584 = vsel %vm1577, %v1566, %v1575
    %v1585 = vsel %vm1577, %v1568, %v1576
    %v1594 = vmul.f32 %v1538, %v1578
    %v1595 = vmul.f32 %v1540, %v1579
    %v1596 = vmul.f32 %v1542, %v1580
    %v1597 = vmul.f32 %v1544, %v1581
    %v1598 = vmul.f32 %v1546, %v1582
    %v1599 = vmul.f32 %v1548, %v1583
    %v1600 = vmul.f32 %v1550, %v1584
    %v1601 = vmul.f32 %v1552, %v1585
    %v1602 = vadd.f32 %v1529, %v1594
    %v1603 = vadd.f32 %v1530, %v1595
    %v1604 = vadd.f32 %v1531, %v1596
    %v1605 = vadd.f32 %v1532, %v1597
    %v1606 = vadd.f32 %v1533, %v1598
    %v1607 = vadd.f32 %v1534, %v1599
    %v1608 = vadd.f32 %v1535, %v1600
    %v1609 = vadd.f32 %v1536, %v1601
    %s1610 = scalar_lea.vmem %s2, 21
    %v1611 = vld [vmem:[%s1610] ss:$8 sm:$0x3]
    %s1612 = scalar_lea.vmem %s2, 85
    %v1613 = vld [vmem:[%s1612] ss:$8 sm:$0x3]
    %s1614 = scalar_lea.vmem %s2, 149
    %v1615 = vld [vmem:[%s1614] ss:$8 sm:$0x3]
    %s1616 = scalar_lea.vmem %s2, 213
    %v1617 = vld [vmem:[%s1616] ss:$8 sm:$0x3]
    %s1618 = scalar_lea.vmem %s2, 277
    %v1619 = vld [vmem:[%s1618] ss:$8 sm:$0x3]
    %s1620 = scalar_lea.vmem %s2, 341
    %v1621 = vld [vmem:[%s1620] ss:$8 sm:$0x3]
    %s1622 = scalar_lea.vmem %s2, 405
    %v1623 = vld [vmem:[%s1622] ss:$8 sm:$0x3]
    %s1624 = scalar_lea.vmem %s2, 469
    %v1625 = vld [vmem:[%s1624] ss:$8 sm:$0x3]
    %1626 = vrot.lane.b32.xlu0 %v154, 93
    %v1627 = vpop.permute.xlu0 %1626
    %1628 = vrot.lane.b32.xlu0 %v168, 93
    %v1629 = vpop.permute.xlu0 %1628
    %1630 = vrot.lane.b32.xlu0 %v176, 93
    %v1631 = vpop.permute.xlu0 %1630
    %1632 = vrot.lane.b32.xlu0 %v178, 93
    %v1633 = vpop.permute.xlu0 %1632
    %1634 = vrot.lane.b32.xlu0 %v161, 93
    %v1635 = vpop.permute.xlu0 %1634
    %1636 = vrot.lane.b32.xlu0 %v175, 93
    %v1637 = vpop.permute.xlu0 %1636
    %1638 = vrot.lane.b32.xlu0 %v177, 93
    %v1639 = vpop.permute.xlu0 %1638
    %1640 = vrot.lane.b32.xlu0 %v179, 93
    %v1641 = vpop.permute.xlu0 %1640
    %v1642 = vrot.slane %v1627, 1
    %v1643 = vrot.slane %v1629, 1
    %v1644 = vrot.slane %v1631, 1
    %v1645 = vrot.slane %v1633, 1
    %v1646 = vrot.slane %v1635, 1
    %v1647 = vrot.slane %v1637, 1
    %v1648 = vrot.slane %v1639, 1
    %v1649 = vrot.slane %v1641, 1
    %vm1650 = vcmask 760832
    %v1651 = vsel %vm1650, %v1627, %v1642
    %v1652 = vsel %vm1650, %v1629, %v1643
    %v1653 = vsel %vm1650, %v1631, %v1644
    %v1654 = vsel %vm1650, %v1633, %v1645
    %v1655 = vsel %vm1650, %v1635, %v1646
    %v1656 = vsel %vm1650, %v1637, %v1647
    %v1657 = vsel %vm1650, %v1639, %v1648
    %v1658 = vsel %vm1650, %v1641, %v1649
    %v1667 = vmul.f32 %v1611, %v1651
    %v1668 = vmul.f32 %v1613, %v1652
    %v1669 = vmul.f32 %v1615, %v1653
    %v1670 = vmul.f32 %v1617, %v1654
    %v1671 = vmul.f32 %v1619, %v1655
    %v1672 = vmul.f32 %v1621, %v1656
    %v1673 = vmul.f32 %v1623, %v1657
    %v1674 = vmul.f32 %v1625, %v1658
    %v1675 = vadd.f32 %v1602, %v1667
    %v1676 = vadd.f32 %v1603, %v1668
    %v1677 = vadd.f32 %v1604, %v1669
    %v1678 = vadd.f32 %v1605, %v1670
    %v1679 = vadd.f32 %v1606, %v1671
    %v1680 = vadd.f32 %v1607, %v1672
    %v1681 = vadd.f32 %v1608, %v1673
    %v1682 = vadd.f32 %v1609, %v1674
    %s1683 = scalar_lea.vmem %s2, 34
    %v1684 = vld [vmem:[%s1683] ss:$8 sm:$0x3]
    %s1685 = scalar_lea.vmem %s2, 98
    %v1686 = vld [vmem:[%s1685] ss:$8 sm:$0x3]
    %s1687 = scalar_lea.vmem %s2, 162
    %v1688 = vld [vmem:[%s1687] ss:$8 sm:$0x3]
    %s1689 = scalar_lea.vmem %s2, 226
    %v1690 = vld [vmem:[%s1689] ss:$8 sm:$0x3]
    %s1691 = scalar_lea.vmem %s2, 290
    %v1692 = vld [vmem:[%s1691] ss:$8 sm:$0x3]
    %s1693 = scalar_lea.vmem %s2, 354
    %v1694 = vld [vmem:[%s1693] ss:$8 sm:$0x3]
    %s1695 = scalar_lea.vmem %s2, 418
    %v1696 = vld [vmem:[%s1695] ss:$8 sm:$0x3]
    %s1697 = scalar_lea.vmem %s2, 482
    %v1698 = vld [vmem:[%s1697] ss:$8 sm:$0x3]
    %1699 = vrot.lane.b32.xlu0 %v154, 77
    %v1700 = vpop.permute.xlu0 %1699
    %1701 = vrot.lane.b32.xlu0 %v168, 77
    %v1702 = vpop.permute.xlu0 %1701
    %1703 = vrot.lane.b32.xlu0 %v176, 77
    %v1704 = vpop.permute.xlu0 %1703
    %1705 = vrot.lane.b32.xlu0 %v178, 77
    %v1706 = vpop.permute.xlu0 %1705
    %1707 = vrot.lane.b32.xlu0 %v161, 77
    %v1708 = vpop.permute.xlu0 %1707
    %1709 = vrot.lane.b32.xlu0 %v175, 77
    %v1710 = vpop.permute.xlu0 %1709
    %1711 = vrot.lane.b32.xlu0 %v177, 77
    %v1712 = vpop.permute.xlu0 %1711
    %1713 = vrot.lane.b32.xlu0 %v179, 77
    %v1714 = vpop.permute.xlu0 %1713
    %v1715 = vrot.slane %v1700, 1
    %v1716 = vrot.slane %v1702, 1
    %v1717 = vrot.slane %v1704, 1
    %v1718 = vrot.slane %v1706, 1
    %v1719 = vrot.slane %v1708, 1
    %v1720 = vrot.slane %v1710, 1
    %v1721 = vrot.slane %v1712, 1
    %v1722 = vrot.slane %v1714, 1
    %vm1723 = vcmask 629760
    %v1724 = vsel %vm1723, %v1700, %v1715
    %v1725 = vsel %vm1723, %v1702, %v1716
    %v1726 = vsel %vm1723, %v1704, %v1717
    %v1727 = vsel %vm1723, %v1706, %v1718
    %v1728 = vsel %vm1723, %v1708, %v1719
    %v1729 = vsel %vm1723, %v1710, %v1720
    %v1730 = vsel %vm1723, %v1712, %v1721
    %v1731 = vsel %vm1723, %v1714, %v1722
    %v1740 = vmul.f32 %v1684, %v1724
    %v1741 = vmul.f32 %v1686, %v1725
    %v1742 = vmul.f32 %v1688, %v1726
    %v1743 = vmul.f32 %v1690, %v1727
    %v1744 = vmul.f32 %v1692, %v1728
    %v1745 = vmul.f32 %v1694, %v1729
    %v1746 = vmul.f32 %v1696, %v1730
    %v1747 = vmul.f32 %v1698, %v1731
    %v1748 = vadd.f32 %v1675, %v1740
    %v1749 = vadd.f32 %v1676, %v1741
    %v1750 = vadd.f32 %v1677, %v1742
    %v1751 = vadd.f32 %v1678, %v1743
    %v1752 = vadd.f32 %v1679, %v1744
    %v1753 = vadd.f32 %v1680, %v1745
    %v1754 = vadd.f32 %v1681, %v1746
    %v1755 = vadd.f32 %v1682, %v1747
    %s1756 = scalar_lea.vmem %s2, 39
    %v1757 = vld [vmem:[%s1756] ss:$8 sm:$0x3]
    %s1758 = scalar_lea.vmem %s2, 103
    %v1759 = vld [vmem:[%s1758] ss:$8 sm:$0x3]
    %s1760 = scalar_lea.vmem %s2, 167
    %v1761 = vld [vmem:[%s1760] ss:$8 sm:$0x3]
    %s1762 = scalar_lea.vmem %s2, 231
    %v1763 = vld [vmem:[%s1762] ss:$8 sm:$0x3]
    %s1764 = scalar_lea.vmem %s2, 295
    %v1765 = vld [vmem:[%s1764] ss:$8 sm:$0x3]
    %s1766 = scalar_lea.vmem %s2, 359
    %v1767 = vld [vmem:[%s1766] ss:$8 sm:$0x3]
    %s1768 = scalar_lea.vmem %s2, 423
    %v1769 = vld [vmem:[%s1768] ss:$8 sm:$0x3]
    %s1770 = scalar_lea.vmem %s2, 487
    %v1771 = vld [vmem:[%s1770] ss:$8 sm:$0x3]
    %1772 = vrot.lane.b32.xlu0 %v154, 61
    %v1773 = vpop.permute.xlu0 %1772
    %1774 = vrot.lane.b32.xlu0 %v168, 61
    %v1775 = vpop.permute.xlu0 %1774
    %1776 = vrot.lane.b32.xlu0 %v176, 61
    %v1777 = vpop.permute.xlu0 %1776
    %1778 = vrot.lane.b32.xlu0 %v178, 61
    %v1779 = vpop.permute.xlu0 %1778
    %1780 = vrot.lane.b32.xlu0 %v161, 61
    %v1781 = vpop.permute.xlu0 %1780
    %1782 = vrot.lane.b32.xlu0 %v175, 61
    %v1783 = vpop.permute.xlu0 %1782
    %1784 = vrot.lane.b32.xlu0 %v177, 61
    %v1785 = vpop.permute.xlu0 %1784
    %1786 = vrot.lane.b32.xlu0 %v179, 61
    %v1787 = vpop.permute.xlu0 %1786
    %v1788 = vrot.slane %v1773, 1
    %v1789 = vrot.slane %v1775, 1
    %v1790 = vrot.slane %v1777, 1
    %v1791 = vrot.slane %v1779, 1
    %v1792 = vrot.slane %v1781, 1
    %v1793 = vrot.slane %v1783, 1
    %v1794 = vrot.slane %v1785, 1
    %v1795 = vrot.slane %v1787, 1
    %vm1796 = vcmask 498688
    %v1797 = vsel %vm1796, %v1773, %v1788
    %v1798 = vsel %vm1796, %v1775, %v1789
    %v1799 = vsel %vm1796, %v1777, %v1790
    %v1800 = vsel %vm1796, %v1779, %v1791
    %v1801 = vsel %vm1796, %v1781, %v1792
    %v1802 = vsel %vm1796, %v1783, %v1793
    %v1803 = vsel %vm1796, %v1785, %v1794
    %v1804 = vsel %vm1796, %v1787, %v1795
    %v1813 = vmul.f32 %v1757, %v1797
    %v1814 = vmul.f32 %v1759, %v1798
    %v1815 = vmul.f32 %v1761, %v1799
    %v1816 = vmul.f32 %v1763, %v1800
    %v1817 = vmul.f32 %v1765, %v1801
    %v1818 = vmul.f32 %v1767, %v1802
    %v1819 = vmul.f32 %v1769, %v1803
    %v1820 = vmul.f32 %v1771, %v1804
    %v1821 = vadd.f32 %v1748, %v1813
    %v1822 = vadd.f32 %v1749, %v1814
    %v1823 = vadd.f32 %v1750, %v1815
    %v1824 = vadd.f32 %v1751, %v1816
    %v1825 = vadd.f32 %v1752, %v1817
    %v1826 = vadd.f32 %v1753, %v1818
    %v1827 = vadd.f32 %v1754, %v1819
    %v1828 = vadd.f32 %v1755, %v1820
    %s1829 = scalar_lea.vmem %s0, 3
    %v1830 = vld [vmem:[%s1829] ss:$8 sm:$0x3]
    %v1832 = vlaneseq
    %v1833 = vshrl.u32 %v1832, 7
    %v1834 = vsub.s32 0, %v1833
    %v1835 = vrot.slane %v1830, %v1834
    %v1836 = vlaneseq
    %v1837 = vshrl.u32 %v1836, 7
    %v1838 = vsub.s32 1, %v1837
    %v1839 = vrot.slane %v1830, %v1838
    %v1850 = vcombine.low %v1821, %v1822
    %v1851 = vcombine.low %v1823, %v1824
    %v1852 = vcombine.low %v1825, %v1826
    %v1853 = vcombine.low %v1827, %v1828
    %v1855 = vunpack.c.l.s4 1966171168
    %v1856 = vunpack.c.0.s8 %v1855
    %v1857 = vlaneseq
    %v1858 = vshrl.u32 %v1857, 7
    %v1859 = vsub.s32 %v1856, %v1858
    %v1860 = vrot.slane %v1850, %v1859
    %v1862 = vunpack.c.l.s4 1966171168
    %v1863 = vunpack.c.0.s8 %v1862
    %v1864 = vlaneseq
    %v1865 = vshrl.u32 %v1864, 7
    %v1866 = vsub.s32 %v1863, %v1865
    %v1867 = vrot.slane %v1851, %v1866
    %v1869 = vunpack.c.l.s4 1966171168
    %v1870 = vunpack.c.0.s8 %v1869
    %v1871 = vlaneseq
    %v1872 = vshrl.u32 %v1871, 7
    %v1873 = vsub.s32 %v1870, %v1872
    %v1874 = vrot.slane %v1852, %v1873
    %v1876 = vunpack.c.l.s4 1966171168
    %v1877 = vunpack.c.0.s8 %v1876
    %v1878 = vlaneseq
    %v1879 = vshrl.u32 %v1878, 7
    %v1880 = vsub.s32 %v1877, %v1879
    %v1881 = vrot.slane %v1853, %v1880
    %v1882 = vcombine.low %v1860, %v1867
    %v1883 = vcombine.high %v1860, %v1867
    %v1884 = vcombine.low %v1874, %v1881
    %v1885 = vcombine.high %v1874, %v1881
    %v1887 = vunpack.c.l.s4 1966171168
    %v1888 = vunpack.c.0.s8 %v1887
    %v1889 = vlaneseq
    %v1890 = vshrl.u32 %v1889, 7
    %v1891 = vsub.s32 %v1888, %v1890
    %v1892 = vrot.slane %v1882, %v1891
    %v1894 = vunpack.c.l.s4 1966171168
    %v1895 = vunpack.c.0.s8 %v1894
    %v1896 = vlaneseq
    %v1897 = vshrl.u32 %v1896, 7
    %v1898 = vsub.s32 %v1895, %v1897
    %v1899 = vrot.slane %v1883, %v1898
    %v1901 = vunpack.c.l.s4 1966171168
    %v1902 = vunpack.c.0.s8 %v1901
    %v1903 = vlaneseq
    %v1904 = vshrl.u32 %v1903, 7
    %v1905 = vsub.s32 %v1902, %v1904
    %v1906 = vrot.slane %v1884, %v1905
    %v1908 = vunpack.c.l.s4 1966171168
    %v1909 = vunpack.c.0.s8 %v1908
    %v1910 = vlaneseq
    %v1911 = vshrl.u32 %v1910, 7
    %v1912 = vsub.s32 %v1909, %v1911
    %v1913 = vrot.slane %v1885, %v1912
    %v1914 = vcombine.low %v1892, %v1906
    %v1915 = vcombine.low %v1899, %v1913
    %v1918 = vmul.f32 %v1835, %v1914
    %v1919 = vmul.f32 %v1839, %v1915
    %v1920 = vadd.f32 %v1462, %v1918
    %v1921 = vadd.f32 %v1463, %v1919
    %s1922 = scalar_lea.vmem %s2, 4
    %v1923 = vld [vmem:[%s1922] ss:$8 sm:$0x3]
    %s1924 = scalar_lea.vmem %s2, 68
    %v1925 = vld [vmem:[%s1924] ss:$8 sm:$0x3]
    %s1926 = scalar_lea.vmem %s2, 132
    %v1927 = vld [vmem:[%s1926] ss:$8 sm:$0x3]
    %s1928 = scalar_lea.vmem %s2, 196
    %v1929 = vld [vmem:[%s1928] ss:$8 sm:$0x3]
    %s1930 = scalar_lea.vmem %s2, 260
    %v1931 = vld [vmem:[%s1930] ss:$8 sm:$0x3]
    %s1932 = scalar_lea.vmem %s2, 324
    %v1933 = vld [vmem:[%s1932] ss:$8 sm:$0x3]
    %s1934 = scalar_lea.vmem %s2, 388
    %v1935 = vld [vmem:[%s1934] ss:$8 sm:$0x3]
    %s1936 = scalar_lea.vmem %s2, 452
    %v1937 = vld [vmem:[%s1936] ss:$8 sm:$0x3]
    %1938 = vrot.lane.b32.xlu0 %v154, 124
    %v1939 = vpop.permute.xlu0 %1938
    %1940 = vrot.lane.b32.xlu0 %v168, 124
    %v1941 = vpop.permute.xlu0 %1940
    %1942 = vrot.lane.b32.xlu0 %v176, 124
    %v1943 = vpop.permute.xlu0 %1942
    %1944 = vrot.lane.b32.xlu0 %v178, 124
    %v1945 = vpop.permute.xlu0 %1944
    %1946 = vrot.lane.b32.xlu0 %v161, 124
    %v1947 = vpop.permute.xlu0 %1946
    %1948 = vrot.lane.b32.xlu0 %v175, 124
    %v1949 = vpop.permute.xlu0 %1948
    %1950 = vrot.lane.b32.xlu0 %v177, 124
    %v1951 = vpop.permute.xlu0 %1950
    %1952 = vrot.lane.b32.xlu0 %v179, 124
    %v1953 = vpop.permute.xlu0 %1952
    %v1954 = vrot.slane %v1939, 1
    %v1955 = vrot.slane %v1941, 1
    %v1956 = vrot.slane %v1943, 1
    %v1957 = vrot.slane %v1945, 1
    %v1958 = vrot.slane %v1947, 1
    %v1959 = vrot.slane %v1949, 1
    %v1960 = vrot.slane %v1951, 1
    %v1961 = vrot.slane %v1953, 1
    %vm1962 = vcmask 1014784
    %v1963 = vsel %vm1962, %v1939, %v1954
    %v1964 = vsel %vm1962, %v1941, %v1955
    %v1965 = vsel %vm1962, %v1943, %v1956
    %v1966 = vsel %vm1962, %v1945, %v1957
    %v1967 = vsel %vm1962, %v1947, %v1958
    %v1968 = vsel %vm1962, %v1949, %v1959
    %v1969 = vsel %vm1962, %v1951, %v1960
    %v1970 = vsel %vm1962, %v1953, %v1961
    %v1979 = vmul.f32 %v1923, %v1963
    %v1980 = vmul.f32 %v1925, %v1964
    %v1981 = vmul.f32 %v1927, %v1965
    %v1982 = vmul.f32 %v1929, %v1966
    %v1983 = vmul.f32 %v1931, %v1967
    %v1984 = vmul.f32 %v1933, %v1968
    %v1985 = vmul.f32 %v1935, %v1969
    %v1986 = vmul.f32 %v1937, %v1970
    %v1987 = vadd.f32 %v1979, 0.0
    %v1988 = vadd.f32 %v1980, 0.0
    %v1989 = vadd.f32 %v1981, 0.0
    %v1990 = vadd.f32 %v1982, 0.0
    %v1991 = vadd.f32 %v1983, 0.0
    %v1992 = vadd.f32 %v1984, 0.0
    %v1993 = vadd.f32 %v1985, 0.0
    %v1994 = vadd.f32 %v1986, 0.0
    %s1995 = scalar_lea.vmem %s2, 17
    %v1996 = vld [vmem:[%s1995] ss:$8 sm:$0x3]
    %s1997 = scalar_lea.vmem %s2, 81
    %v1998 = vld [vmem:[%s1997] ss:$8 sm:$0x3]
    %s1999 = scalar_lea.vmem %s2, 145
    %v2000 = vld [vmem:[%s1999] ss:$8 sm:$0x3]
    %s2001 = scalar_lea.vmem %s2, 209
    %v2002 = vld [vmem:[%s2001] ss:$8 sm:$0x3]
    %s2003 = scalar_lea.vmem %s2, 273
    %v2004 = vld [vmem:[%s2003] ss:$8 sm:$0x3]
    %s2005 = scalar_lea.vmem %s2, 337
    %v2006 = vld [vmem:[%s2005] ss:$8 sm:$0x3]
    %s2007 = scalar_lea.vmem %s2, 401
    %v2008 = vld [vmem:[%s2007] ss:$8 sm:$0x3]
    %s2009 = scalar_lea.vmem %s2, 465
    %v2010 = vld [vmem:[%s2009] ss:$8 sm:$0x3]
    %2011 = vrot.lane.b32.xlu0 %v154, 108
    %v2012 = vpop.permute.xlu0 %2011
    %2013 = vrot.lane.b32.xlu0 %v168, 108
    %v2014 = vpop.permute.xlu0 %2013
    %2015 = vrot.lane.b32.xlu0 %v176, 108
    %v2016 = vpop.permute.xlu0 %2015
    %2017 = vrot.lane.b32.xlu0 %v178, 108
    %v2018 = vpop.permute.xlu0 %2017
    %2019 = vrot.lane.b32.xlu0 %v161, 108
    %v2020 = vpop.permute.xlu0 %2019
    %2021 = vrot.lane.b32.xlu0 %v175, 108
    %v2022 = vpop.permute.xlu0 %2021
    %2023 = vrot.lane.b32.xlu0 %v177, 108
    %v2024 = vpop.permute.xlu0 %2023
    %2025 = vrot.lane.b32.xlu0 %v179, 108
    %v2026 = vpop.permute.xlu0 %2025
    %v2027 = vrot.slane %v2012, 1
    %v2028 = vrot.slane %v2014, 1
    %v2029 = vrot.slane %v2016, 1
    %v2030 = vrot.slane %v2018, 1
    %v2031 = vrot.slane %v2020, 1
    %v2032 = vrot.slane %v2022, 1
    %v2033 = vrot.slane %v2024, 1
    %v2034 = vrot.slane %v2026, 1
    %vm2035 = vcmask 883712
    %v2036 = vsel %vm2035, %v2012, %v2027
    %v2037 = vsel %vm2035, %v2014, %v2028
    %v2038 = vsel %vm2035, %v2016, %v2029
    %v2039 = vsel %vm2035, %v2018, %v2030
    %v2040 = vsel %vm2035, %v2020, %v2031
    %v2041 = vsel %vm2035, %v2022, %v2032
    %v2042 = vsel %vm2035, %v2024, %v2033
    %v2043 = vsel %vm2035, %v2026, %v2034
    %v2052 = vmul.f32 %v1996, %v2036
    %v2053 = vmul.f32 %v1998, %v2037
    %v2054 = vmul.f32 %v2000, %v2038
    %v2055 = vmul.f32 %v2002, %v2039
    %v2056 = vmul.f32 %v2004, %v2040
    %v2057 = vmul.f32 %v2006, %v2041
    %v2058 = vmul.f32 %v2008, %v2042
    %v2059 = vmul.f32 %v2010, %v2043
    %v2060 = vadd.f32 %v1987, %v2052
    %v2061 = vadd.f32 %v1988, %v2053
    %v2062 = vadd.f32 %v1989, %v2054
    %v2063 = vadd.f32 %v1990, %v2055
    %v2064 = vadd.f32 %v1991, %v2056
    %v2065 = vadd.f32 %v1992, %v2057
    %v2066 = vadd.f32 %v1993, %v2058
    %v2067 = vadd.f32 %v1994, %v2059
    %s2068 = scalar_lea.vmem %s2, 22
    %v2069 = vld [vmem:[%s2068] ss:$8 sm:$0x3]
    %s2070 = scalar_lea.vmem %s2, 86
    %v2071 = vld [vmem:[%s2070] ss:$8 sm:$0x3]
    %s2072 = scalar_lea.vmem %s2, 150
    %v2073 = vld [vmem:[%s2072] ss:$8 sm:$0x3]
    %s2074 = scalar_lea.vmem %s2, 214
    %v2075 = vld [vmem:[%s2074] ss:$8 sm:$0x3]
    %s2076 = scalar_lea.vmem %s2, 278
    %v2077 = vld [vmem:[%s2076] ss:$8 sm:$0x3]
    %s2078 = scalar_lea.vmem %s2, 342
    %v2079 = vld [vmem:[%s2078] ss:$8 sm:$0x3]
    %s2080 = scalar_lea.vmem %s2, 406
    %v2081 = vld [vmem:[%s2080] ss:$8 sm:$0x3]
    %s2082 = scalar_lea.vmem %s2, 470
    %v2083 = vld [vmem:[%s2082] ss:$8 sm:$0x3]
    %2084 = vrot.lane.b32.xlu0 %v154, 92
    %v2085 = vpop.permute.xlu0 %2084
    %2086 = vrot.lane.b32.xlu0 %v168, 92
    %v2087 = vpop.permute.xlu0 %2086
    %2088 = vrot.lane.b32.xlu0 %v176, 92
    %v2089 = vpop.permute.xlu0 %2088
    %2090 = vrot.lane.b32.xlu0 %v178, 92
    %v2091 = vpop.permute.xlu0 %2090
    %2092 = vrot.lane.b32.xlu0 %v161, 92
    %v2093 = vpop.permute.xlu0 %2092
    %2094 = vrot.lane.b32.xlu0 %v175, 92
    %v2095 = vpop.permute.xlu0 %2094
    %2096 = vrot.lane.b32.xlu0 %v177, 92
    %v2097 = vpop.permute.xlu0 %2096
    %2098 = vrot.lane.b32.xlu0 %v179, 92
    %v2099 = vpop.permute.xlu0 %2098
    %v2100 = vrot.slane %v2085, 1
    %v2101 = vrot.slane %v2087, 1
    %v2102 = vrot.slane %v2089, 1
    %v2103 = vrot.slane %v2091, 1
    %v2104 = vrot.slane %v2093, 1
    %v2105 = vrot.slane %v2095, 1
    %v2106 = vrot.slane %v2097, 1
    %v2107 = vrot.slane %v2099, 1
    %vm2108 = vcmask 752640
    %v2109 = vsel %vm2108, %v2085, %v2100
    %v2110 = vsel %vm2108, %v2087, %v2101
    %v2111 = vsel %vm2108, %v2089, %v2102
    %v2112 = vsel %vm2108, %v2091, %v2103
    %v2113 = vsel %vm2108, %v2093, %v2104
    %v2114 = vsel %vm2108, %v2095, %v2105
    %v2115 = vsel %vm2108, %v2097, %v2106
    %v2116 = vsel %vm2108, %v2099, %v2107
    %v2125 = vmul.f32 %v2069, %v2109
    %v2126 = vmul.f32 %v2071, %v2110
    %v2127 = vmul.f32 %v2073, %v2111
    %v2128 = vmul.f32 %v2075, %v2112
    %v2129 = vmul.f32 %v2077, %v2113
    %v2130 = vmul.f32 %v2079, %v2114
    %v2131 = vmul.f32 %v2081, %v2115
    %v2132 = vmul.f32 %v2083, %v2116
    %v2133 = vadd.f32 %v2060, %v2125
    %v2134 = vadd.f32 %v2061, %v2126
    %v2135 = vadd.f32 %v2062, %v2127
    %v2136 = vadd.f32 %v2063, %v2128
    %v2137 = vadd.f32 %v2064, %v2129
    %v2138 = vadd.f32 %v2065, %v2130
    %v2139 = vadd.f32 %v2066, %v2131
    %v2140 = vadd.f32 %v2067, %v2132
    %s2141 = scalar_lea.vmem %s2, 35
    %v2142 = vld [vmem:[%s2141] ss:$8 sm:$0x3]
    %s2143 = scalar_lea.vmem %s2, 99
    %v2144 = vld [vmem:[%s2143] ss:$8 sm:$0x3]
    %s2145 = scalar_lea.vmem %s2, 163
    %v2146 = vld [vmem:[%s2145] ss:$8 sm:$0x3]
    %s2147 = scalar_lea.vmem %s2, 227
    %v2148 = vld [vmem:[%s2147] ss:$8 sm:$0x3]
    %s2149 = scalar_lea.vmem %s2, 291
    %v2150 = vld [vmem:[%s2149] ss:$8 sm:$0x3]
    %s2151 = scalar_lea.vmem %s2, 355
    %v2152 = vld [vmem:[%s2151] ss:$8 sm:$0x3]
    %s2153 = scalar_lea.vmem %s2, 419
    %v2154 = vld [vmem:[%s2153] ss:$8 sm:$0x3]
    %s2155 = scalar_lea.vmem %s2, 483
    %v2156 = vld [vmem:[%s2155] ss:$8 sm:$0x3]
    %2157 = vrot.lane.b32.xlu0 %v154, 76
    %v2158 = vpop.permute.xlu0 %2157
    %2159 = vrot.lane.b32.xlu0 %v168, 76
    %v2160 = vpop.permute.xlu0 %2159
    %2161 = vrot.lane.b32.xlu0 %v176, 76
    %v2162 = vpop.permute.xlu0 %2161
    %2163 = vrot.lane.b32.xlu0 %v178, 76
    %v2164 = vpop.permute.xlu0 %2163
    %2165 = vrot.lane.b32.xlu0 %v161, 76
    %v2166 = vpop.permute.xlu0 %2165
    %2167 = vrot.lane.b32.xlu0 %v175, 76
    %v2168 = vpop.permute.xlu0 %2167
    %2169 = vrot.lane.b32.xlu0 %v177, 76
    %v2170 = vpop.permute.xlu0 %2169
    %2171 = vrot.lane.b32.xlu0 %v179, 76
    %v2172 = vpop.permute.xlu0 %2171
    %v2173 = vrot.slane %v2158, 1
    %v2174 = vrot.slane %v2160, 1
    %v2175 = vrot.slane %v2162, 1
    %v2176 = vrot.slane %v2164, 1
    %v2177 = vrot.slane %v2166, 1
    %v2178 = vrot.slane %v2168, 1
    %v2179 = vrot.slane %v2170, 1
    %v2180 = vrot.slane %v2172, 1
    %vm2181 = vcmask 621568
    %v2182 = vsel %vm2181, %v2158, %v2173
    %v2183 = vsel %vm2181, %v2160, %v2174
    %v2184 = vsel %vm2181, %v2162, %v2175
    %v2185 = vsel %vm2181, %v2164, %v2176
    %v2186 = vsel %vm2181, %v2166, %v2177
    %v2187 = vsel %vm2181, %v2168, %v2178
    %v2188 = vsel %vm2181, %v2170, %v2179
    %v2189 = vsel %vm2181, %v2172, %v2180
    %v2198 = vmul.f32 %v2142, %v2182
    %v2199 = vmul.f32 %v2144, %v2183
    %v2200 = vmul.f32 %v2146, %v2184
    %v2201 = vmul.f32 %v2148, %v2185
    %v2202 = vmul.f32 %v2150, %v2186
    %v2203 = vmul.f32 %v2152, %v2187
    %v2204 = vmul.f32 %v2154, %v2188
    %v2205 = vmul.f32 %v2156, %v2189
    %v2206 = vadd.f32 %v2133, %v2198
    %v2207 = vadd.f32 %v2134, %v2199
    %v2208 = vadd.f32 %v2135, %v2200
    %v2209 = vadd.f32 %v2136, %v2201
    %v2210 = vadd.f32 %v2137, %v2202
    %v2211 = vadd.f32 %v2138, %v2203
    %v2212 = vadd.f32 %v2139, %v2204
    %v2213 = vadd.f32 %v2140, %v2205
    %s2214 = scalar_lea.vmem %s2, 48
    %v2215 = vld [vmem:[%s2214] ss:$8 sm:$0x3]
    %s2216 = scalar_lea.vmem %s2, 112
    %v2217 = vld [vmem:[%s2216] ss:$8 sm:$0x3]
    %s2218 = scalar_lea.vmem %s2, 176
    %v2219 = vld [vmem:[%s2218] ss:$8 sm:$0x3]
    %s2220 = scalar_lea.vmem %s2, 240
    %v2221 = vld [vmem:[%s2220] ss:$8 sm:$0x3]
    %s2222 = scalar_lea.vmem %s2, 304
    %v2223 = vld [vmem:[%s2222] ss:$8 sm:$0x3]
    %s2224 = scalar_lea.vmem %s2, 368
    %v2225 = vld [vmem:[%s2224] ss:$8 sm:$0x3]
    %s2226 = scalar_lea.vmem %s2, 432
    %v2227 = vld [vmem:[%s2226] ss:$8 sm:$0x3]
    %s2228 = scalar_lea.vmem %s2, 496
    %v2229 = vld [vmem:[%s2228] ss:$8 sm:$0x3]
    %2230 = vrot.lane.b32.xlu0 %v154, 60
    %v2231 = vpop.permute.xlu0 %2230
    %2232 = vrot.lane.b32.xlu0 %v168, 60
    %v2233 = vpop.permute.xlu0 %2232
    %2234 = vrot.lane.b32.xlu0 %v176, 60
    %v2235 = vpop.permute.xlu0 %2234
    %2236 = vrot.lane.b32.xlu0 %v178, 60
    %v2237 = vpop.permute.xlu0 %2236
    %2238 = vrot.lane.b32.xlu0 %v161, 60
    %v2239 = vpop.permute.xlu0 %2238
    %2240 = vrot.lane.b32.xlu0 %v175, 60
    %v2241 = vpop.permute.xlu0 %2240
    %2242 = vrot.lane.b32.xlu0 %v177, 60
    %v2243 = vpop.permute.xlu0 %2242
    %2244 = vrot.lane.b32.xlu0 %v179, 60
    %v2245 = vpop.permute.xlu0 %2244
    %v2246 = vrot.slane %v2231, 1
    %v2247 = vrot.slane %v2233, 1
    %v2248 = vrot.slane %v2235, 1
    %v2249 = vrot.slane %v2237, 1
    %v2250 = vrot.slane %v2239, 1
    %v2251 = vrot.slane %v2241, 1
    %v2252 = vrot.slane %v2243, 1
    %v2253 = vrot.slane %v2245, 1
    %vm2254 = vcmask 490496
    %v2255 = vsel %vm2254, %v2231, %v2246
    %v2256 = vsel %vm2254, %v2233, %v2247
    %v2257 = vsel %vm2254, %v2235, %v2248
    %v2258 = vsel %vm2254, %v2237, %v2249
    %v2259 = vsel %vm2254, %v2239, %v2250
    %v2260 = vsel %vm2254, %v2241, %v2251
    %v2261 = vsel %vm2254, %v2243, %v2252
    %v2262 = vsel %vm2254, %v2245, %v2253
    %v2271 = vmul.f32 %v2215, %v2255
    %v2272 = vmul.f32 %v2217, %v2256
    %v2273 = vmul.f32 %v2219, %v2257
    %v2274 = vmul.f32 %v2221, %v2258
    %v2275 = vmul.f32 %v2223, %v2259
    %v2276 = vmul.f32 %v2225, %v2260
    %v2277 = vmul.f32 %v2227, %v2261
    %v2278 = vmul.f32 %v2229, %v2262
    %v2279 = vadd.f32 %v2206, %v2271
    %v2280 = vadd.f32 %v2207, %v2272
    %v2281 = vadd.f32 %v2208, %v2273
    %v2282 = vadd.f32 %v2209, %v2274
    %v2283 = vadd.f32 %v2210, %v2275
    %v2284 = vadd.f32 %v2211, %v2276
    %v2285 = vadd.f32 %v2212, %v2277
    %v2286 = vadd.f32 %v2213, %v2278
    %s2287 = scalar_lea.vmem %s0, 4
    %v2288 = vld [vmem:[%s2287] ss:$8 sm:$0x3]
    %v2290 = vlaneseq
    %v2291 = vshrl.u32 %v2290, 7
    %v2292 = vsub.s32 0, %v2291
    %v2293 = vrot.slane %v2288, %v2292
    %v2294 = vlaneseq
    %v2295 = vshrl.u32 %v2294, 7
    %v2296 = vsub.s32 1, %v2295
    %v2297 = vrot.slane %v2288, %v2296
    %v2308 = vcombine.low %v2279, %v2280
    %v2309 = vcombine.low %v2281, %v2282
    %v2310 = vcombine.low %v2283, %v2284
    %v2311 = vcombine.low %v2285, %v2286
    %v2313 = vunpack.c.l.s4 1966171168
    %v2314 = vunpack.c.0.s8 %v2313
    %v2315 = vlaneseq
    %v2316 = vshrl.u32 %v2315, 7
    %v2317 = vsub.s32 %v2314, %v2316
    %v2318 = vrot.slane %v2308, %v2317
    %v2320 = vunpack.c.l.s4 1966171168
    %v2321 = vunpack.c.0.s8 %v2320
    %v2322 = vlaneseq
    %v2323 = vshrl.u32 %v2322, 7
    %v2324 = vsub.s32 %v2321, %v2323
    %v2325 = vrot.slane %v2309, %v2324
    %v2327 = vunpack.c.l.s4 1966171168
    %v2328 = vunpack.c.0.s8 %v2327
    %v2329 = vlaneseq
    %v2330 = vshrl.u32 %v2329, 7
    %v2331 = vsub.s32 %v2328, %v2330
    %v2332 = vrot.slane %v2310, %v2331
    %v2334 = vunpack.c.l.s4 1966171168
    %v2335 = vunpack.c.0.s8 %v2334
    %v2336 = vlaneseq
    %v2337 = vshrl.u32 %v2336, 7
    %v2338 = vsub.s32 %v2335, %v2337
    %v2339 = vrot.slane %v2311, %v2338
    %v2340 = vcombine.low %v2318, %v2325
    %v2341 = vcombine.high %v2318, %v2325
    %v2342 = vcombine.low %v2332, %v2339
    %v2343 = vcombine.high %v2332, %v2339
    %v2345 = vunpack.c.l.s4 1966171168
    %v2346 = vunpack.c.0.s8 %v2345
    %v2347 = vlaneseq
    %v2348 = vshrl.u32 %v2347, 7
    %v2349 = vsub.s32 %v2346, %v2348
    %v2350 = vrot.slane %v2340, %v2349
    %v2352 = vunpack.c.l.s4 1966171168
    %v2353 = vunpack.c.0.s8 %v2352
    %v2354 = vlaneseq
    %v2355 = vshrl.u32 %v2354, 7
    %v2356 = vsub.s32 %v2353, %v2355
    %v2357 = vrot.slane %v2341, %v2356
    %v2359 = vunpack.c.l.s4 1966171168
    %v2360 = vunpack.c.0.s8 %v2359
    %v2361 = vlaneseq
    %v2362 = vshrl.u32 %v2361, 7
    %v2363 = vsub.s32 %v2360, %v2362
    %v2364 = vrot.slane %v2342, %v2363
    %v2366 = vunpack.c.l.s4 1966171168
    %v2367 = vunpack.c.0.s8 %v2366
    %v2368 = vlaneseq
    %v2369 = vshrl.u32 %v2368, 7
    %v2370 = vsub.s32 %v2367, %v2369
    %v2371 = vrot.slane %v2343, %v2370
    %v2372 = vcombine.low %v2350, %v2364
    %v2373 = vcombine.low %v2357, %v2371
    %v2376 = vmul.f32 %v2293, %v2372
    %v2377 = vmul.f32 %v2297, %v2373
    %v2378 = vadd.f32 %v1920, %v2376
    %v2379 = vadd.f32 %v1921, %v2377
    %v2380 = vld [vmem:[%s3] sm:$0xff]
    %v2381 = vld [vmem:[%s3 + $0x8] sm:$0xff]
    %v2382 = vmul.f32 %v2380, %v2378
    %v2383 = vmul.f32 %v2381, %v2379
    %2384 = vst [vmem:[#allocation2] sm:$0xff] %v2382
    %2385 = vst [vmem:[#allocation2 + $0x8] sm:$0xff] %v2383
    // Predicated region
    $region18: #{tpu_custom_call.1} parent=1 // pred_check
      _
    $region19: #{tpu_custom_call.1} parent=1 // pred_check_branch
      %2387 = sbr.rel (0) target = $region21
    $region20: #{tpu_custom_call.1} parent=1 // pred_region
      %s2389 = ssub.s32 256, 256
      %2390 = vsyncadd [#allocation3], %s2389
      %s2392 = sshll.u32 [#allocation2], 4
      %s2393 = int_to_ptr.vmem [resolvable:$true] %s2392
      %2395 = dma.vmem_to_hbm [thread:$0]  %s2393, 256, %s4, [#allocation3]
    $region21: #{tpu_custom_call.1} parent=1 // pred_fallthru
      _
    // Predicated region
    $region22: #{tpu_custom_call.1} parent=1 // pred_check
      _
    $region23: #{tpu_custom_call.1} parent=1 // pred_check_branch
      %2397 = sbr.rel (0) target = $region25
    $region24: #{tpu_custom_call.1} parent=1 // pred_region
      %2398 = dma.done [#allocation3], 256
    $region25: #{tpu_custom_call.1} parent=1 // pred_fallthru
      _
    %2399 = vsyncpa [#allocation3], 1

</llo_original>
